<compile_context>
chip_gen: v6e
topology: v6e:2x2x1
jax: 0.10.0
libtpu: 0.0.40
codegen_flags: <defaults>
</compile_context>

<pallas_src>
import functools

import jax
import jax.numpy as jnp
import numpy as np
from jax.experimental import pallas as pl
from jax.experimental.pallas import tpu as pltpu


IN_CHANNELS = 7
N_CLASSES = 18
LATENT_DIM = 128
BN_EPS = 1e-5


def _round_up(n, m):
    return ((n + m - 1) // m) * m


def _pick_bt(batch, t):
    """Batch-tile size.

    Targets M = bt*(T+4) >= ~512 rows per grid step, keeps bt a multiple of 8
    (BlockSpec sublane divisibility when grid > 1) and guarantees >= 2 grid
    steps when the batch allows it (v7x has 2 TensorCores). For batch <= 8 we
    use a single full-array step: the work is trivial and sub-8 tiles would
    violate the (8,128) block constraint.
    """
    target = min(64, max(8, _round_up(-(-512 // (t + 4)), 8)))
    if batch <= 8:
        return batch
    half = max(8, _round_up(batch, 16) // 2)   # multiple of 8, >= 2 steps
    return int(min(target, half))


# ---------------------------------------------------------------------------
# Kernel factory. Activations live in "stacked" 2-D layout: batch elements are
# laid back-to-back along the sublane axis, channels on the lane axis. Conv is
# computed for *all* stacked rows; rows that straddle two elements are garbage
# and are zeroed by a precomputed 0/1 mask, so they double as the next stage's
# conv halo. Each conv stage is one big bf16 MXU matmul (im2col), f32 accum.
# ---------------------------------------------------------------------------
def _make_kernel(bt, t, fp, c1, c2, c3):
    s1 = t + 4                  # stage-1 rows per element (T + 2*pad), even
    s1h = s1 // 2               # = T/2 + 2 : pooled-1 rows per element
    s2h = t // 4 + 1            # pooled-2 rows per element
    g1 = bt * s1h               # pooled-1 rows (stacked, incl. garbage rows)
    r2 = g1 + 2                 # stage-2 padded buffer rows (2 leading zeros)
    m2 = r2 - 4                 # stage-2 conv output rows
    g2 = m2 // 2                # pooled-2 rows
    r3 = bt * s2h + 2           # stage-3 padded buffer rows
    m3 = r3 - 2                 # stage-3 conv output rows = bt*s2h

    def kernel(x_ref, w1_ref, b1_ref, w2_ref, b2_ref, w3_ref, b3_ref,
               mk1_ref, mk23_ref, latent_ref, pad2_ref, pad3_ref):
        f32 = jnp.float32
        bf16 = jnp.bfloat16

        # ---- stage 1: Conv1d(F->32, k=5, p=2) + BN + ReLU + MaxPool(2) ----
        # x_ref is the wrapper-precomputed im2col slab: (bt*s1, 5*fp) bf16.
        h = jnp.dot(x_ref[...], w1_ref[...], preferred_element_type=f32)
        h = jnp.maximum(h + b1_ref[...], 0.0)                 # (bt*s1, c1)
        hp = h.reshape(g1, 2, c1)                             # pairs stay in-element
        h = jnp.maximum(hp[:, 0, :], hp[:, 1, :])             # (g1, c1)
        # zero inter-element garbage rows -> they become conv-2 halo zeros
        h = h * mk1_ref[...]
        pad2_ref[0:2, :] = jnp.zeros((2, c1), bf16)
        pad2_ref[2:r2, :] = h.astype(bf16)

        # ---- stage 2: Conv1d(32->64, k=5, p=2) + BN + ReLU + MaxPool(2) ---
        col = jnp.concatenate([pad2_ref[k:k + m2, :] for k in range(5)], axis=-1)
        h = jnp.dot(col, w2_ref[...], preferred_element_type=f32)
        h = jnp.maximum(h + b2_ref[...], 0.0)                 # (m2, c2)
        hp = h.reshape(g2, 2, c2)
        h = jnp.maximum(hp[:, 0, :], hp[:, 1, :])             # (g2, c2)
        h = h * mk23_ref[0:g2, :]
        pad3_ref[0:1, :] = jnp.zeros((1, c2), bf16)
        pad3_ref[1:1 + g2, :] = h.astype(bf16)
        pad3_ref[r3 - 2:r3, :] = jnp.zeros((2, c2), bf16)

        # ---- stage 3: Conv1d(64->latent, k=3, p=1) + BN + ReLU ------------
        col = jnp.concatenate([pad3_ref[k:k + m3, :] for k in range(3)], axis=-1)
        h = jnp.dot(col, w3_ref[...], preferred_element_type=f32)
        h = jnp.maximum(h + b3_ref[...], 0.0)                 # (m3, c3), >= 0

        # ---- AdaptiveMaxPool1d(1) -----------------------------------------
        # garbage rows -> 0; safe because post-ReLU valid maxima are >= 0.
        h = h * mk23_ref[...]
        latent_ref[...] = jnp.max(h.reshape(bt, s2h, c3), axis=1)   # (bt, c3)

    return kernel


# ---------------------------------------------------------------------------
# Wrapper: BN folding, im2col weight packing (bf16), stage-1 im2col packing of
# the input (bf16), precomputed row-validity masks, batch-tiled grid.
# ---------------------------------------------------------------------------
def fold_bn(w, b, gamma, beta, mean, var, eps=BN_EPS):
    """Fold eval-mode BatchNorm1d into conv weights (k, Cin, Cout) + bias."""
    scale = gamma / jnp.sqrt(var + eps)
    return w * scale[None, None, :], (b - mean) * scale + beta


def _pack_w(w, cin, cin_p):
    """(K, Cin, Cout) f32 -> im2col layout (K*cin_p, Cout), bf16."""
    k = w.shape[0]
    if cin_p != cin:
        w = jnp.pad(w, ((0, 0), (0, cin_p - cin), (0, 0)))
    return w.reshape(k * cin_p, w.shape[2]).astype(jnp.bfloat16)


def init_params(key, in_channels=IN_CHANNELS, n_classes=N_CLASSES,
                latent_dim=LATENT_DIM):
    """Deterministic synthetic init (PyTorch-shaped, BN at default params)."""
    ks = jax.random.split(key, 8)

    def conv_w(k, shape):                 # (out, in, kernel) -> (kernel, in, out)
        fan_in = shape[1] * shape[2]
        w = jax.random.uniform(k, shape, jnp.float32, -1.0, 1.0) / np.sqrt(fan_in)
        return jnp.transpose(w, (2, 1, 0))

    p = {}
    p["w1"] = conv_w(ks[0], (32, in_channels, 5))
    p["b1"] = jax.random.uniform(ks[1], (32,), jnp.float32, -0.1, 0.1)
    p["w2"] = conv_w(ks[2], (64, 32, 5))
    p["b2"] = jax.random.uniform(ks[3], (64,), jnp.float32, -0.1, 0.1)
    p["w3"] = conv_w(ks[4], (latent_dim, 64, 3))
    p["b3"] = jax.random.uniform(ks[5], (latent_dim,), jnp.float32, -0.1, 0.1)
    p["wc"] = (jax.random.uniform(ks[6], (latent_dim, n_classes), jnp.float32,
                                  -1.0, 1.0) / np.sqrt(latent_dim))
    p["bc"] = jax.random.uniform(ks[7], (n_classes,), jnp.float32, -0.1, 0.1)
    for i, c in zip((1, 2, 3), (32, 64, latent_dim)):
        p[f"bn{i}_gamma"] = jnp.ones((c,), jnp.float32)
        p[f"bn{i}_beta"] = jnp.zeros((c,), jnp.float32)
        p[f"bn{i}_mean"] = jnp.zeros((c,), jnp.float32)
        p[f"bn{i}_var"] = jnp.ones((c,), jnp.float32)
    return p


@functools.partial(jax.jit, static_argnames=("return_logits",))
def cnn_encoder_forward(x, params, return_logits=False):
    """x: (B, T, F) or (T, F) with F = in_channels. Returns latent [, logits]."""
    if x.ndim == 2:
        x = x[None]
    x = x.astype(jnp.float32)
    B, T, F = x.shape
    assert T % 4 == 0 and T >= 4, "T must be >= 4 and divisible by 4"

    latent_dim = params["w3"].shape[2]
    c1, c2, c3 = params["w1"].shape[2], params["w2"].shape[2], latent_dim

    # BN folded in eval mode (running stats); training-mode BN not supported.
    w1, b1 = fold_bn(params["w1"], params["b1"], params["bn1_gamma"],
                     params["bn1_beta"], params["bn1_mean"], params["bn1_var"])
    w2, b2 = fold_bn(params["w2"], params["b2"], params["bn2_gamma"],
                     params["bn2_beta"], params["bn2_mean"], params["bn2_var"])
    w3, b3 = fold_bn(params["w3"], params["b3"], params["bn3_gamma"],
                     params["bn3_beta"], params["bn3_mean"], params["bn3_var"])

    fp = max(8, _round_up(F, 8))                 # channel pad (sublane density)
    w1p = _pack_w(w1, F, fp)                     # (5*fp, c1) bf16
    w2p = _pack_w(w2, c1, c1)                    # (5*c1, c2) bf16
    w3p = _pack_w(w3, c2, c2)                    # (3*c2, c3) bf16

    bt = _pick_bt(B, T)
    bp = _round_up(B, bt)
    s1 = T + 4
    s1h = T // 2 + 2
    s2h = T // 4 + 1

    # Input packing: batch pad + per-element 2-row time halos + channel pad,
    # then wrapper-side stage-1 im2col -> (bp*s1, 5*fp) bf16 slab.
    xs = jnp.pad(x, ((0, bp - B), (2, 2), (0, fp - F)))     # (bp, s1, fp)
    slab = xs.reshape(bp * s1, fp)
    slab = jnp.pad(slab, ((0, 4), (0, 0)))                  # tail halo for im2col
    col1 = jnp.concatenate([slab[k:k + bp * s1] for k in range(5)], axis=-1)
    col1 = col1.astype(jnp.bfloat16)                        # (bp*s1, 5*fp)

    # Precomputed 0/1 row-validity masks (shared by every grid step).
    g1 = bt * s1h
    m3 = bt * s2h
    r2 = g1 + 2
    r3 = m3 + 2
    mask1 = (jnp.arange(g1) % s1h < T // 2).astype(jnp.float32)[:, None]
    mask23 = (jnp.arange(m3) % s2h < T // 4).astype(jnp.float32)[:, None]

    kernel = _make_kernel(bt, T, fp, c1, c2, c3)
    latent = pl.pallas_call(
        kernel,
        out_shape=jax.ShapeDtypeStruct((bp, c3), jnp.float32),
        grid_spec=pltpu.PrefetchScalarGridSpec(
            num_scalar_prefetch=0,
            grid=(bp // bt,),
            in_specs=[
                pl.BlockSpec((bt * s1, 5 * fp), lambda i: (i, 0)),  # stage-1 im2col
                pl.BlockSpec((5 * fp, c1), lambda i: (0, 0)),       # w1 (bf16)
                pl.BlockSpec((1, c1), lambda i: (0, 0)),            # b1
                pl.BlockSpec((5 * c1, c2), lambda i: (0, 0)),       # w2
                pl.BlockSpec((1, c2), lambda i: (0, 0)),            # b2
                pl.BlockSpec((3 * c2, c3), lambda i: (0, 0)),       # w3
                pl.BlockSpec((1, c3), lambda i: (0, 0)),            # b3
                pl.BlockSpec((g1, 1), lambda i: (0, 0)),            # mask (pool-1)
                pl.BlockSpec((m3, 1), lambda i: (0, 0)),            # mask (pool-2/3)
            ],
            out_specs=pl.BlockSpec((bt, c3), lambda i: (i, 0)),     # latent
            scratch_shapes=[
                pltpu.VMEM((r2, c1), jnp.bfloat16),   # stage-2 padded activations
                pltpu.VMEM((r3, c2), jnp.bfloat16),   # stage-3 padded activations
            ],
        ),
        compiler_params=pltpu.CompilerParams(
            dimension_semantics=("parallel",),          # batch tiles -> both TCs
            vmem_limit_bytes=32 * 1024 * 1024),         # safe on v5e/v6e/v7x
    )(col1, w1p, b1[None, :], w2p, b2[None, :], w3p, b3[None, :], mask1, mask23)

    latent = latent[:B]
    if return_logits:
        # Classifier head as one fused f32 XLA matmul over all latents.
        logits = latent @ params["wc"] + params["bc"]
        return latent, logits
    return latent


# ---------------------------------------------------------------------------
# Pure-JAX reference (f32 everywhere) for the correctness check.
# ---------------------------------------------------------------------------
def _ref_forward(x, params):
    def conv_bn_relu(h, w, b, g, be, m, v, pad):
        wf, bf = fold_bn(w, b, g, be, m, v)
        y = jax.lax.conv_general_dilated(
            h, wf, window_strides=(1,), padding=[(pad, pad)],
            dimension_numbers=("NWC", "WIO", "NWC"))
        return jnp.maximum(y + bf[None, None, :], 0.0)

    def maxpool2(h):
        B, T, C = h.shape
        return jnp.max(h.reshape(B, T // 2, 2, C), axis=2)

    h = x.astype(jnp.float32)
    h = maxpool2(conv_bn_relu(h, params["w1"], params["b1"], params["bn1_gamma"],
                              params["bn1_beta"], params["bn1_mean"],
                              params["bn1_var"], 2))
    h = maxpool2(conv_bn_relu(h, params["w2"], params["b2"], params["bn2_gamma"],
                              params["bn2_beta"], params["bn2_mean"],
                              params["bn2_var"], 2))
    h = conv_bn_relu(h, params["w3"], params["b3"], params["bn3_gamma"],
                     params["bn3_beta"], params["bn3_mean"], params["bn3_var"], 1)
    latent = jnp.max(h, axis=1)                       # AdaptiveMaxPool1d(1)
    logits = latent @ params["wc"] + params["bc"]
    return latent, logits


if __name__ == "__main__":
    key = jax.random.PRNGKey(0)
    pkey, xkey, xkey2 = jax.random.split(key, 3)

    params = init_params(pkey)

    # Tolerance is 3e-2 (not 1e-3) because the MXU operands are bf16; the
    # reference is computed fully in f32.
    TOL = 3e-2

    # small example consistent with the module: (B, T, F) = (2, 16, 7)
    # -> single grid step (blocks cover full arrays)
    x = jax.random.normal(xkey, (2, 16, IN_CHANNELS), dtype=jnp.float32)
    latent, logits = cnn_encoder_forward(x, params, return_logits=True)
    latent = jax.block_until_ready(latent)
    logits = jax.block_until_ready(logits)
    assert latent.shape == (2, LATENT_DIM) and logits.shape == (2, N_CLASSES)
    ref_latent, ref_logits = _ref_forward(x, params)
    np.testing.assert_allclose(np.asarray(latent), np.asarray(ref_latent),
                               rtol=TOL, atol=TOL)
    np.testing.assert_allclose(np.asarray(logits), np.asarray(ref_logits),
                               rtol=TOL, atol=TOL)

    # exercise the batch-tiled grid (2 grid steps + batch padding): B = 9 -> bt=8, bp=16
    x2 = jax.random.normal(xkey2, (9, 16, IN_CHANNELS), dtype=jnp.float32)
    latent2, logits2 = cnn_encoder_forward(x2, params, return_logits=True)
    latent2 = jax.block_until_ready(latent2)
    logits2 = jax.block_until_ready(logits2)
    ref_latent2, ref_logits2 = _ref_forward(x2, params)
    np.testing.assert_allclose(np.asarray(latent2), np.asarray(ref_latent2),
                               rtol=TOL, atol=TOL)
    np.testing.assert_allclose(np.asarray(logits2), np.asarray(ref_logits2),
                               rtol=TOL, atol=TOL)

    # latent-only path (default module behaviour)
    latent_only = jax.block_until_ready(cnn_encoder_forward(x2, params))
    np.testing.assert_allclose(np.asarray(latent_only), np.asarray(ref_latent2),
                               rtol=TOL, atol=TOL)

    print("KERNEL_OK")
</pallas_src>

<mosaic_0001>
module attributes {stable_mosaic.version = 11 : i64} {
  func.func @kernel(%arg0: i32, %arg1: memref<40x40xbf16, #tpu.memory_space<vmem>>, %arg2: memref<40x32xbf16, #tpu.memory_space<vmem>>, %arg3: memref<1x32xf32, #tpu.memory_space<vmem>>, %arg4: memref<160x64xbf16, #tpu.memory_space<vmem>>, %arg5: memref<1x64xf32, #tpu.memory_space<vmem>>, %arg6: memref<192x128xbf16, #tpu.memory_space<vmem>>, %arg7: memref<1x128xf32, #tpu.memory_space<vmem>>, %arg8: memref<20x1xf32, #tpu.memory_space<vmem>>, %arg9: memref<10x1xf32, #tpu.memory_space<vmem>>, %arg10: memref<2x128xf32, #tpu.memory_space<vmem>>, %arg11: memref<22x32xbf16, #tpu.memory_space<vmem>>, %arg12: memref<12x64xbf16, #tpu.memory_space<vmem>>) attributes {dimension_semantics = [#tpu.dimension_semantics<parallel>], iteration_bounds = array<i64: 1>, scalar_prefetch = 0 : i64, scratch_operands = 2 : i64, tpu.core_type = #tpu.core_type<tc>, window_params = [{transform_indices = @transform_0, window_bounds = array<i64: 40, 40>}, {pipeline_mode = #tpu.pipeline_mode<synchronous>, transform_indices = @transform_1, window_bounds = array<i64: 40, 32>}, {pipeline_mode = #tpu.pipeline_mode<synchronous>, transform_indices = @transform_2, window_bounds = array<i64: 1, 32>}, {pipeline_mode = #tpu.pipeline_mode<synchronous>, transform_indices = @transform_3, window_bounds = array<i64: 160, 64>}, {pipeline_mode = #tpu.pipeline_mode<synchronous>, transform_indices = @transform_4, window_bounds = array<i64: 1, 64>}, {pipeline_mode = #tpu.pipeline_mode<synchronous>, transform_indices = @transform_5, window_bounds = array<i64: 192, 128>}, {pipeline_mode = #tpu.pipeline_mode<synchronous>, transform_indices = @transform_6, window_bounds = array<i64: 1, 128>}, {pipeline_mode = #tpu.pipeline_mode<synchronous>, transform_indices = @transform_7, window_bounds = array<i64: 20, 1>}, {pipeline_mode = #tpu.pipeline_mode<synchronous>, transform_indices = @transform_8, window_bounds = array<i64: 10, 1>}, {transform_indices = @transform_9, window_bounds = array<i64: 2, 128>}]} {
    %c0 = arith.constant 0 : index
    %c0_0 = arith.constant 0 : index
    %0 = vector.load %arg1[%c0, %c0_0] : memref<40x40xbf16, #tpu.memory_space<vmem>>, vector<40x40xbf16>
    %c0_1 = arith.constant 0 : index
    %c0_2 = arith.constant 0 : index
    %1 = vector.load %arg2[%c0_1, %c0_2] : memref<40x32xbf16, #tpu.memory_space<vmem>>, vector<40x32xbf16>
    %cst = arith.constant dense<0.000000e+00> : vector<40x32xf32>
    %2 = tpu.matmul %0, %1, %cst {dimension_numbers = #tpu.dot_dimension_numbers<[1], [0], [0], [1], [0, 0, 1, 1], [], []>} : vector<40x40xbf16>, vector<40x32xbf16>, vector<40x32xf32> -> vector<40x32xf32>
    %c0_3 = arith.constant 0 : index
    %c0_4 = arith.constant 0 : index
    %3 = vector.load %arg3[%c0_3, %c0_4] : memref<1x32xf32, #tpu.memory_space<vmem>>, vector<1x32xf32>
    %4 = vector.broadcast %3 : vector<1x32xf32> to vector<40x32xf32>
    %5 = arith.addf %2, %4 : vector<40x32xf32>
    %cst_5 = arith.constant 0.000000e+00 : f32
    %6 = vector.broadcast %cst_5 : f32 to vector<40x32xf32>
    %7 = arith.maximumf %5, %6 : vector<40x32xf32>
    %8 = vector.shape_cast %7 : vector<40x32xf32> to vector<20x2x32xf32>
    %9 = vector.extract_strided_slice %8 {offsets = [0, 0, 0], sizes = [20, 1, 32], strides = [1, 1, 1]} : vector<20x2x32xf32> to vector<20x1x32xf32>
    %10 = vector.shape_cast %9 : vector<20x1x32xf32> to vector<20x32xf32>
    %11 = vector.extract_strided_slice %8 {offsets = [0, 1, 0], sizes = [20, 1, 32], strides = [1, 1, 1]} : vector<20x2x32xf32> to vector<20x1x32xf32>
    %12 = vector.shape_cast %11 : vector<20x1x32xf32> to vector<20x32xf32>
    %13 = arith.maximumf %10, %12 : vector<20x32xf32>
    %c0_6 = arith.constant 0 : index
    %c0_7 = arith.constant 0 : index
    %14 = vector.load %arg8[%c0_6, %c0_7] : memref<20x1xf32, #tpu.memory_space<vmem>>, vector<20x1xf32>
    %15 = vector.broadcast %14 : vector<20x1xf32> to vector<20x32xf32>
    %16 = arith.mulf %13, %15 : vector<20x32xf32>
    %cst_8 = arith.constant 0.000000e+00 : bf16
    %17 = vector.broadcast %cst_8 : bf16 to vector<2x32xbf16>
    %c0_9 = arith.constant 0 : index
    %c0_10 = arith.constant 0 : index
    %18 = vector.load %arg11[%c0_9, %c0_10] : memref<22x32xbf16, #tpu.memory_space<vmem>>, vector<2x32xbf16>
    tpu.vector_store %arg11[%c0_9, %c0_10], %17 {strides = array<i32>} : memref<22x32xbf16, #tpu.memory_space<vmem>>, vector<2x32xbf16>,
    %19 = arith.truncf %16 : vector<20x32xf32> to vector<20x32xbf16>
    %c2 = arith.constant 2 : index
    %c0_11 = arith.constant 0 : index
    %20 = vector.load %arg11[%c2, %c0_11] : memref<22x32xbf16, #tpu.memory_space<vmem>>, vector<20x32xbf16>
    tpu.vector_store %arg11[%c2, %c0_11], %19 {strides = array<i32>} : memref<22x32xbf16, #tpu.memory_space<vmem>>, vector<20x32xbf16>,
    %c0_12 = arith.constant 0 : index
    %c0_13 = arith.constant 0 : index
    %21 = vector.load %arg11[%c0_12, %c0_13] : memref<22x32xbf16, #tpu.memory_space<vmem>>, vector<18x32xbf16>
    %c1 = arith.constant 1 : index
    %c0_14 = arith.constant 0 : index
    %22 = vector.load %arg11[%c1, %c0_14] : memref<22x32xbf16, #tpu.memory_space<vmem>>, vector<18x32xbf16>
    %c2_15 = arith.constant 2 : index
    %c0_16 = arith.constant 0 : index
    %23 = vector.load %arg11[%c2_15, %c0_16] : memref<22x32xbf16, #tpu.memory_space<vmem>>, vector<18x32xbf16>
    %c3 = arith.constant 3 : index
    %c0_17 = arith.constant 0 : index
    %24 = vector.load %arg11[%c3, %c0_17] : memref<22x32xbf16, #tpu.memory_space<vmem>>, vector<18x32xbf16>
    %c4 = arith.constant 4 : index
    %c0_18 = arith.constant 0 : index
    %25 = vector.load %arg11[%c4, %c0_18] : memref<22x32xbf16, #tpu.memory_space<vmem>>, vector<18x32xbf16>
    %26 = tpu.concatenate %21, %22, %23, %24, %25 in 1 : vector<18x32xbf16>, vector<18x32xbf16>, vector<18x32xbf16>, vector<18x32xbf16>, vector<18x32xbf16> -> vector<18x160xbf16>
    %c0_19 = arith.constant 0 : index
    %c0_20 = arith.constant 0 : index
    %27 = vector.load %arg4[%c0_19, %c0_20] : memref<160x64xbf16, #tpu.memory_space<vmem>>, vector<160x64xbf16>
    %cst_21 = arith.constant dense<0.000000e+00> : vector<18x64xf32>
    %28 = tpu.matmul %26, %27, %cst_21 {dimension_numbers = #tpu.dot_dimension_numbers<[1], [0], [0], [1], [0, 0, 1, 1], [], []>} : vector<18x160xbf16>, vector<160x64xbf16>, vector<18x64xf32> -> vector<18x64xf32>
    %c0_22 = arith.constant 0 : index
    %c0_23 = arith.constant 0 : index
    %29 = vector.load %arg5[%c0_22, %c0_23] : memref<1x64xf32, #tpu.memory_space<vmem>>, vector<1x64xf32>
    %30 = vector.broadcast %29 : vector<1x64xf32> to vector<18x64xf32>
    %31 = arith.addf %28, %30 : vector<18x64xf32>
    %cst_24 = arith.constant 0.000000e+00 : f32
    %32 = vector.broadcast %cst_24 : f32 to vector<18x64xf32>
    %33 = arith.maximumf %31, %32 : vector<18x64xf32>
    %34 = vector.shape_cast %33 : vector<18x64xf32> to vector<9x2x64xf32>
    %35 = vector.extract_strided_slice %34 {offsets = [0, 0, 0], sizes = [9, 1, 64], strides = [1, 1, 1]} : vector<9x2x64xf32> to vector<9x1x64xf32>
    %36 = vector.shape_cast %35 : vector<9x1x64xf32> to vector<9x64xf32>
    %37 = vector.extract_strided_slice %34 {offsets = [0, 1, 0], sizes = [9, 1, 64], strides = [1, 1, 1]} : vector<9x2x64xf32> to vector<9x1x64xf32>
    %38 = vector.shape_cast %37 : vector<9x1x64xf32> to vector<9x64xf32>
    %39 = arith.maximumf %36, %38 : vector<9x64xf32>
    %c0_25 = arith.constant 0 : index
    %c0_26 = arith.constant 0 : index
    %40 = vector.load %arg9[%c0_25, %c0_26] : memref<10x1xf32, #tpu.memory_space<vmem>>, vector<9x1xf32>
    %41 = vector.broadcast %40 : vector<9x1xf32> to vector<9x64xf32>
    %42 = arith.mulf %39, %41 : vector<9x64xf32>
    %cst_27 = arith.constant 0.000000e+00 : bf16
    %43 = vector.broadcast %cst_27 : bf16 to vector<1x64xbf16>
    %c0_28 = arith.constant 0 : index
    %c0_29 = arith.constant 0 : index
    %44 = vector.load %arg12[%c0_28, %c0_29] : memref<12x64xbf16, #tpu.memory_space<vmem>>, vector<1x64xbf16>
    tpu.vector_store %arg12[%c0_28, %c0_29], %43 {strides = array<i32>} : memref<12x64xbf16, #tpu.memory_space<vmem>>, vector<1x64xbf16>,
    %45 = arith.truncf %42 : vector<9x64xf32> to vector<9x64xbf16>
    %c1_30 = arith.constant 1 : index
    %c0_31 = arith.constant 0 : index
    %46 = vector.load %arg12[%c1_30, %c0_31] : memref<12x64xbf16, #tpu.memory_space<vmem>>, vector<9x64xbf16>
    tpu.vector_store %arg12[%c1_30, %c0_31], %45 {strides = array<i32>} : memref<12x64xbf16, #tpu.memory_space<vmem>>, vector<9x64xbf16>,
    %cst_32 = arith.constant 0.000000e+00 : bf16
    %47 = vector.broadcast %cst_32 : bf16 to vector<2x64xbf16>
    %c10 = arith.constant 10 : index
    %c0_33 = arith.constant 0 : index
    %48 = vector.load %arg12[%c10, %c0_33] : memref<12x64xbf16, #tpu.memory_space<vmem>>, vector<2x64xbf16>
    tpu.vector_store %arg12[%c10, %c0_33], %47 {strides = array<i32>} : memref<12x64xbf16, #tpu.memory_space<vmem>>, vector<2x64xbf16>,
    %c0_34 = arith.constant 0 : index
    %c0_35 = arith.constant 0 : index
    %49 = vector.load %arg12[%c0_34, %c0_35] : memref<12x64xbf16, #tpu.memory_space<vmem>>, vector<10x64xbf16>
    %c1_36 = arith.constant 1 : index
    %c0_37 = arith.constant 0 : index
    %50 = vector.load %arg12[%c1_36, %c0_37] : memref<12x64xbf16, #tpu.memory_space<vmem>>, vector<10x64xbf16>
    %c2_38 = arith.constant 2 : index
    %c0_39 = arith.constant 0 : index
    %51 = vector.load %arg12[%c2_38, %c0_39] : memref<12x64xbf16, #tpu.memory_space<vmem>>, vector<10x64xbf16>
    %52 = tpu.concatenate %49, %50, %51 in 1 : vector<10x64xbf16>, vector<10x64xbf16>, vector<10x64xbf16> -> vector<10x192xbf16>
    %c0_40 = arith.constant 0 : index
    %c0_41 = arith.constant 0 : index
    %53 = vector.load %arg6[%c0_40, %c0_41] : memref<192x128xbf16, #tpu.memory_space<vmem>>, vector<192x128xbf16>
    %cst_42 = arith.constant dense<0.000000e+00> : vector<10x128xf32>
    %54 = tpu.matmul %52, %53, %cst_42 {dimension_numbers = #tpu.dot_dimension_numbers<[1], [0], [0], [1], [0, 0, 1, 1], [], []>} : vector<10x192xbf16>, vector<192x128xbf16>, vector<10x128xf32> -> vector<10x128xf32>
    %c0_43 = arith.constant 0 : index
    %c0_44 = arith.constant 0 : index
    %55 = vector.load %arg7[%c0_43, %c0_44] : memref<1x128xf32, #tpu.memory_space<vmem>>, vector<1x128xf32>
    %56 = vector.broadcast %55 : vector<1x128xf32> to vector<10x128xf32>
    %57 = arith.addf %54, %56 : vector<10x128xf32>
    %cst_45 = arith.constant 0.000000e+00 : f32
    %58 = vector.broadcast %cst_45 : f32 to vector<10x128xf32>
    %59 = arith.maximumf %57, %58 : vector<10x128xf32>
    %c0_46 = arith.constant 0 : index
    %c0_47 = arith.constant 0 : index
    %60 = vector.load %arg9[%c0_46, %c0_47] : memref<10x1xf32, #tpu.memory_space<vmem>>, vector<10x1xf32>
    %61 = vector.broadcast %60 : vector<10x1xf32> to vector<10x128xf32>
    %62 = arith.mulf %59, %61 : vector<10x128xf32>
    %63 = vector.shape_cast %62 : vector<10x128xf32> to vector<2x5x128xf32>
    %cst_48 = arith.constant dense<0xFF800000> : vector<2x128xf32>
    %64 = vector.multi_reduction <maximumf>, %63, %cst_48 [1] : vector<2x5x128xf32> to vector<2x128xf32>
    %c0_49 = arith.constant 0 : index
    %c0_50 = arith.constant 0 : index
    %65 = vector.load %arg10[%c0_49, %c0_50] : memref<2x128xf32, #tpu.memory_space<vmem>>, vector<2x128xf32>
    tpu.vector_store %arg10[%c0_49, %c0_50], %64 {strides = array<i32>} : memref<2x128xf32, #tpu.memory_space<vmem>>, vector<2x128xf32>,
    return
  }
  func.func @transform_0(%arg0: i32) -> (i32, i32) {
    %c0_i32 = arith.constant 0 : i32
    %c0_i32_0 = arith.constant 0 : i32
    return %arg0, %c0_i32 : i32, i32
  }
  func.func @transform_1(%arg0: i32) -> (i32, i32) {
    %c0_i32 = arith.constant 0 : i32
    %c0_i32_0 = arith.constant 0 : i32
    %c0_i32_1 = arith.constant 0 : i32
    return %c0_i32, %c0_i32_0 : i32, i32
  }
  func.func @transform_2(%arg0: i32) -> (i32, i32) {
    %c0_i32 = arith.constant 0 : i32
    %c0_i32_0 = arith.constant 0 : i32
    %c0_i32_1 = arith.constant 0 : i32
    return %c0_i32, %c0_i32_0 : i32, i32
  }
  func.func @transform_3(%arg0: i32) -> (i32, i32) {
    %c0_i32 = arith.constant 0 : i32
    %c0_i32_0 = arith.constant 0 : i32
    %c0_i32_1 = arith.constant 0 : i32
    return %c0_i32, %c0_i32_0 : i32, i32
  }
  func.func @transform_4(%arg0: i32) -> (i32, i32) {
    %c0_i32 = arith.constant 0 : i32
    %c0_i32_0 = arith.constant 0 : i32
    %c0_i32_1 = arith.constant 0 : i32
    return %c0_i32, %c0_i32_0 : i32, i32
  }
  func.func @transform_5(%arg0: i32) -> (i32, i32) {
    %c0_i32 = arith.constant 0 : i32
    %c0_i32_0 = arith.constant 0 : i32
    %c0_i32_1 = arith.constant 0 : i32
    return %c0_i32, %c0_i32_0 : i32, i32
  }
  func.func @transform_6(%arg0: i32) -> (i32, i32) {
    %c0_i32 = arith.constant 0 : i32
    %c0_i32_0 = arith.constant 0 : i32
    %c0_i32_1 = arith.constant 0 : i32
    return %c0_i32, %c0_i32_0 : i32, i32
  }
  func.func @transform_7(%arg0: i32) -> (i32, i32) {
    %c0_i32 = arith.constant 0 : i32
    %c0_i32_0 = arith.constant 0 : i32
    %c0_i32_1 = arith.constant 0 : i32
    return %c0_i32, %c0_i32_0 : i32, i32
  }
  func.func @transform_8(%arg0: i32) -> (i32, i32) {
    %c0_i32 = arith.constant 0 : i32
    %c0_i32_0 = arith.constant 0 : i32
    %c0_i32_1 = arith.constant 0 : i32
    return %c0_i32, %c0_i32_0 : i32, i32
  }
  func.func @transform_9(%arg0: i32) -> (i32, i32) {
    %c0_i32 = arith.constant 0 : i32
    %c0_i32_0 = arith.constant 0 : i32
    return %arg0, %c0_i32 : i32, i32
  }
}

</mosaic_0001>

<llo_original>
// kernel: cnn_encoder_forward.1
$region0: #{cnn_encoder_forward.1}
  #allocation0 [shape = 'u32[]', space=smem, size = 0x4, offset = 0x4, fixed_abs, tag = 'smem constant byte address 0x4 - core index']
  #allocation1 [shape = 'u32[144,128]{1,0:T(1,128)}', space=vmem, size = 0x12000, scoped, tag = 'internal scratch']
  #allocation2 [shape = 'bf16[22,32]{1,0:T(8,128)(2,1)}', space=vmem, size = 0x1800, scoped, tag = 'scratch operand']
  #allocation3 [shape = 'bf16[12,64]{1,0:T(8,128)(2,1)}', space=vmem, size = 0x1000, scoped, tag = 'scratch operand']
  %s0 = inlined_call_operand.vmem [shape: bf16[40,40], index: 0, kind: input, shape index: {}]
  %s1 = inlined_call_operand.vmem [shape: bf16[40,32], index: 1, kind: input, shape index: {}]
  %s2 = inlined_call_operand.vmem [shape: f32[1,32], index: 2, kind: input, shape index: {}]
  %s3 = inlined_call_operand.vmem [shape: bf16[160,64], index: 3, kind: input, shape index: {}]
  %s4 = inlined_call_operand.vmem [shape: f32[1,64], index: 4, kind: input, shape index: {}]
  %s5 = inlined_call_operand.vmem [shape: bf16[192,128], index: 5, kind: input, shape index: {}]
  %s6 = inlined_call_operand.vmem [shape: f32[1,128], index: 6, kind: input, shape index: {}]
  %s7 = inlined_call_operand.vmem [shape: f32[20,1], index: 7, kind: input, shape index: {}]
  %s8 = inlined_call_operand.vmem [shape: f32[10,1], index: 8, kind: input, shape index: {}]
  %s9 = inlined_call_operand.vmem [shape: f32[2,128], index: 9, kind: output, shape index: {}]
  %s10 = sld [smem:[#allocation0]]
  $region46: #{cnn_encoder_forward.1} parent=0
    _
  %s12 = ssub.s32 1, %s10
  %s13 = scalar_select 0, %s12, %s10
  // Predicated region
  $region2: #{cnn_encoder_forward.1} parent=0 // pred_check
    _
  $region3: #{cnn_encoder_forward.1} parent=0 // pred_check_branch
    %15 = sbr.rel (0) target = $region5
  $region4: #{cnn_encoder_forward.1} parent=0 // pred_region
    _
  $region5: #{cnn_encoder_forward.1} parent=0 // pred_fallthru
    _
  // Predicated region
  $region6: #{cnn_encoder_forward.1} parent=0 // pred_check
    _
  $region7: #{cnn_encoder_forward.1} parent=0 // pred_check_branch
    %17 = sbr.rel (0) target = $region9
  $region8: #{cnn_encoder_forward.1} parent=0 // pred_region
    _
  $region9: #{cnn_encoder_forward.1} parent=0 // pred_fallthru
    _
  // Predicated region
  $region10: #{cnn_encoder_forward.1} parent=0 // pred_check
    _
  $region11: #{cnn_encoder_forward.1} parent=0 // pred_check_branch
    %19 = sbr.rel (0) target = $region13
  $region12: #{cnn_encoder_forward.1} parent=0 // pred_region
    _
  $region13: #{cnn_encoder_forward.1} parent=0 // pred_fallthru
    _
  // Predicated region
  $region14: #{cnn_encoder_forward.1} parent=0 // pred_check
    _
  $region15: #{cnn_encoder_forward.1} parent=0 // pred_check_branch
    %21 = sbr.rel (0) target = $region17
  $region16: #{cnn_encoder_forward.1} parent=0 // pred_region
    _
  $region17: #{cnn_encoder_forward.1} parent=0 // pred_fallthru
    _
  // Predicated region
  $region18: #{cnn_encoder_forward.1} parent=0 // pred_check
    _
  $region19: #{cnn_encoder_forward.1} parent=0 // pred_check_branch
    %23 = sbr.rel (0) target = $region21
  $region20: #{cnn_encoder_forward.1} parent=0 // pred_region
    _
  $region21: #{cnn_encoder_forward.1} parent=0 // pred_fallthru
    _
  // Predicated region
  $region22: #{cnn_encoder_forward.1} parent=0 // pred_check
    _
  $region23: #{cnn_encoder_forward.1} parent=0 // pred_check_branch
    %25 = sbr.rel (0) target = $region25
  $region24: #{cnn_encoder_forward.1} parent=0 // pred_region
    _
  $region25: #{cnn_encoder_forward.1} parent=0 // pred_fallthru
    _
  // Predicated region
  $region26: #{cnn_encoder_forward.1} parent=0 // pred_check
    _
  $region27: #{cnn_encoder_forward.1} parent=0 // pred_check_branch
    %27 = sbr.rel (0) target = $region29
  $region28: #{cnn_encoder_forward.1} parent=0 // pred_region
    _
  $region29: #{cnn_encoder_forward.1} parent=0 // pred_fallthru
    _
  // Predicated region
  $region30: #{cnn_encoder_forward.1} parent=0 // pred_check
    _
  $region31: #{cnn_encoder_forward.1} parent=0 // pred_check_branch
    %29 = sbr.rel (0) target = $region33
  $region32: #{cnn_encoder_forward.1} parent=0 // pred_region
    _
  $region33: #{cnn_encoder_forward.1} parent=0 // pred_fallthru
    _
  // Predicated region
  $region34: #{cnn_encoder_forward.1} parent=0 // pred_check
    _
  $region35: #{cnn_encoder_forward.1} parent=0 // pred_check_branch
    %31 = sbr.rel (0) target = $region37
  $region36: #{cnn_encoder_forward.1} parent=0 // pred_region
    _
  $region37: #{cnn_encoder_forward.1} parent=0 // pred_fallthru
    _
  %v33 = vld [vmem:[%s0] sm:$0xf]
  %v34 = vld [vmem:[%s0 + $0x4] sm:$0xf]
  %v35 = vld [vmem:[%s0 + $0x8] sm:$0xf]
  %v36 = vld [vmem:[%s0 + $0xc] sm:$0xf]
  %v37 = vld [vmem:[%s0 + $0x10] sm:$0xf]
  %v38 = vld [vmem:[%s1] sm:$0xf]
  %v39 = vld [vmem:[%s1 + $0x4] sm:$0xf]
  %v40 = vld [vmem:[%s1 + $0x8] sm:$0xf]
  %v41 = vld [vmem:[%s1 + $0xc] sm:$0xf]
  %v42 = vld [vmem:[%s1 + $0x10] sm:$0xf]
  %v43 = vld [vmem:[%s2] sm:$0x1]
  %v45 = vlaneseq
  %v46 = vshrl.u32 %v45, 7
  %v47 = vsub.s32 0, %v46
  %v48 = vrot.slane %v43, %v47
  %v55 = vunpack.c.l.b16 %v33
  %v56 = vunpack.c.l.b16 %v34
  %v57 = vunpack.c.l.b16 %v35
  %v58 = vunpack.c.l.b16 %v36
  %v59 = vunpack.c.l.b16 %v37
  %v60 = vpack.c.b16 %v56, %v55
  %v61 = vpack.c.b16 %v58, %v57
  %v62 = vpack.c.b16 %v59, %v59
  %v68 = vunpack.c.l.b16 %v38
  %v69 = vunpack.c.l.b16 %v39
  %v70 = vunpack.c.l.b16 %v40
  %v71 = vunpack.c.l.b16 %v41
  %v72 = vunpack.c.l.b16 %v42
  %v73 = vpack.c.b16 %v69, %v68
  %v74 = vpack.c.b16 %v71, %v70
  %v75 = vpack.c.b16 %v72, %v72
  %vm78 = vcmask 326656
  %v80 = vsel %vm78, %v60, 0
  %v83 = vsel %vm78, %v61, 0
  %v86 = vsel %vm78, %v62, 0
  %vm88 = vcmask 1043456
  %v90 = vsel %vm88, %v75, 0
  %92 = vmatprep.subr.bf16.mxu0 0
  %93 = vmatpush1.bf16.msra.mxu0 0
  %94 = vmatprep.subr.bf16.mxu0 0
  %95 = vmatpush1.bf16.msra.mxu0 0
  %96 = vmatprep.subr.bf16.mxu0 0
  %97 = vmatpush1.bf16.msra.mxu0 0
  %98 = vmatprep.subr.bf16.mxu0 0
  %99 = vmatpush1.bf16.msra.mxu0 0
  %100 = vmatprep.subr.bf16.mxu0 0
  %101 = vmatpush1.bf16.msra.mxu0 0
  %102 = vmatprep.subr.bf16.mxu0 0
  %103 = vmatpush1.bf16.msra.mxu0 %v90
  %104 = vmatprep.subr.bf16.mxu0 0
  %105 = vmatpush1.bf16.msra.mxu0 %v74
  %106 = vmatprep.subr.bf16.mxu0 0
  %107 = vmatpush1.bf16.msra.mxu0 %v73
  %108 = vmatprep.subr.bf16.mxu0 0
  %109 = vmatpush2.bf16.msra.mxu0 0
  %110 = vmatprep.subr.bf16.mxu0 0
  %111 = vmatpush2.bf16.msra.mxu0 0
  %112 = vmatprep.subr.bf16.mxu0 0
  %113 = vmatpush2.bf16.msra.mxu0 0
  %114 = vmatprep.subr.bf16.mxu0 0
  %115 = vmatpush2.bf16.msra.mxu0 0
  %116 = vmatprep.subr.bf16.mxu0 0
  %117 = vmatpush2.bf16.msra.mxu0 0
  %118 = vmatprep.subr.bf16.mxu0 0
  %119 = vmatpush2.bf16.msra.mxu0 0
  %120 = vmatprep.subr.bf16.mxu0 0
  %121 = vmatpush2.bf16.msra.mxu0 0
  %122 = vmatprep.subr.bf16.mxu0 0
  %123 = vmatpush2.bf16.msra.mxu0 0
  %124 = vmatprep.mubr.bf16.mxu0 0
  %125 = vmatmul.mubr.bf16.gmra.mxu0 %v80
  %v126 = vpop.f32.mrf.mxu0
  %v127 = vadd.f32 %v48, %v126
  %v128 = vpop.f32.mrf.mxu0
  %v129 = vpop.f32.mrf.mxu0
  %v130 = vadd.f32 %v48, %v129
  %v131 = vpop.f32.mrf.mxu0
  %132 = vmatprep.mubr.bf16.mxu0 0
  %133 = vmatmul.mubr.bf16.gmra.mxu0 %v83
  %v134 = vpop.f32.mrf.mxu0
  %v135 = vadd.f32 %v48, %v134
  %v136 = vpop.f32.mrf.mxu0
  %v137 = vpop.f32.mrf.mxu0
  %v138 = vadd.f32 %v48, %v137
  %v139 = vpop.f32.mrf.mxu0
  %140 = vmatprep.mubr.bf16.mxu0 0
  %141 = vmatmul.mubr.bf16.gmra.mxu0 %v86
  %v142 = vpop.f32.mrf.mxu0
  %v143 = vadd.f32 %v48, %v142
  %v144 = vpop.f32.mrf.mxu0
  %v145 = vpop.f32.mrf.mxu0
  %v146 = vpop.f32.mrf.mxu0
  %147 = vdwg.mxu0
  %v148 = vmax.f32 %v127, 0.0
  %v149 = vmax.f32 %v130, 0.0
  %v150 = vmax.f32 %v135, 0.0
  %v151 = vmax.f32 %v138, 0.0
  %v152 = vmax.f32 %v143, 0.0
  %v158 = vcombine.high %v148, %v148
  %v160 = vunpack.c.l.s4 1983009808
  %v161 = vunpack.c.0.s8 %v160
  %v162 = vlaneseq
  %v163 = vshrl.u32 %v162, 7
  %v164 = vsub.s32 %v161, %v163
  %v165 = vrot.slane %v148, %v164
  %v167 = vunpack.c.l.s4 1983009808
  %v168 = vunpack.c.0.s8 %v167
  %v169 = vlaneseq
  %v170 = vshrl.u32 %v169, 7
  %v171 = vsub.s32 %v168, %v170
  %v172 = vrot.slane %v158, %v171
  %v173 = vcombine.high %v165, %v165
  %v174 = vcombine.high %v172, %v172
  %v175 = vcombine.high %v149, %v149
  %v177 = vunpack.c.l.s4 1983009808
  %v178 = vunpack.c.0.s8 %v177
  %v179 = vlaneseq
  %v180 = vshrl.u32 %v179, 7
  %v181 = vsub.s32 %v178, %v180
  %v182 = vrot.slane %v149, %v181
  %v184 = vunpack.c.l.s4 1983009808
  %v185 = vunpack.c.0.s8 %v184
  %v186 = vlaneseq
  %v187 = vshrl.u32 %v186, 7
  %v188 = vsub.s32 %v185, %v187
  %v189 = vrot.slane %v175, %v188
  %v190 = vcombine.high %v182, %v182
  %v191 = vcombine.high %v189, %v189
  %v192 = vcombine.high %v150, %v150
  %v194 = vunpack.c.l.s4 1983009808
  %v195 = vunpack.c.0.s8 %v194
  %v196 = vlaneseq
  %v197 = vshrl.u32 %v196, 7
  %v198 = vsub.s32 %v195, %v197
  %v199 = vrot.slane %v150, %v198
  %v201 = vunpack.c.l.s4 1983009808
  %v202 = vunpack.c.0.s8 %v201
  %v203 = vlaneseq
  %v204 = vshrl.u32 %v203, 7
  %v205 = vsub.s32 %v202, %v204
  %v206 = vrot.slane %v192, %v205
  %v207 = vcombine.high %v199, %v199
  %v208 = vcombine.high %v206, %v206
  %v209 = vcombine.high %v151, %v151
  %v211 = vunpack.c.l.s4 1983009808
  %v212 = vunpack.c.0.s8 %v211
  %v213 = vlaneseq
  %v214 = vshrl.u32 %v213, 7
  %v215 = vsub.s32 %v212, %v214
  %v216 = vrot.slane %v151, %v215
  %v218 = vunpack.c.l.s4 1983009808
  %v219 = vunpack.c.0.s8 %v218
  %v220 = vlaneseq
  %v221 = vshrl.u32 %v220, 7
  %v222 = vsub.s32 %v219, %v221
  %v223 = vrot.slane %v209, %v222
  %v224 = vcombine.high %v216, %v216
  %v225 = vcombine.high %v223, %v223
  %v226 = vcombine.high %v152, %v152
  %v228 = vunpack.c.l.s4 1983009808
  %v229 = vunpack.c.0.s8 %v228
  %v230 = vlaneseq
  %v231 = vshrl.u32 %v230, 7
  %v232 = vsub.s32 %v229, %v231
  %v233 = vrot.slane %v152, %v232
  %v235 = vunpack.c.l.s4 1983009808
  %v236 = vunpack.c.0.s8 %v235
  %v237 = vlaneseq
  %v238 = vshrl.u32 %v237, 7
  %v239 = vsub.s32 %v236, %v238
  %v240 = vrot.slane %v226, %v239
  %v241 = vcombine.high %v233, %v233
  %v242 = vcombine.high %v240, %v240
  %v263 = vrot.slane %v165, 7
  %v264 = vrot.slane %v263, 2
  %v265 = vrot.slane %v173, 7
  %v266 = vrot.slane %v265, 2
  %v267 = vrot.slane %v172, 7
  %v268 = vrot.slane %v267, 2
  %v269 = vrot.slane %v174, 7
  %v270 = vrot.slane %v269, 2
  %v271 = vrot.slane %v182, 7
  %v272 = vrot.slane %v271, 2
  %v273 = vrot.slane %v190, 7
  %v274 = vrot.slane %v273, 2
  %v275 = vrot.slane %v189, 7
  %v276 = vrot.slane %v275, 2
  %v277 = vrot.slane %v191, 7
  %v278 = vrot.slane %v277, 2
  %v279 = vrot.slane %v199, 7
  %v280 = vrot.slane %v279, 2
  %v281 = vrot.slane %v207, 7
  %v282 = vrot.slane %v281, 2
  %v283 = vrot.slane %v206, 7
  %v284 = vrot.slane %v283, 2
  %v285 = vrot.slane %v208, 7
  %v286 = vrot.slane %v285, 2
  %v287 = vrot.slane %v216, 7
  %v288 = vrot.slane %v287, 2
  %v289 = vrot.slane %v224, 7
  %v290 = vrot.slane %v289, 2
  %v291 = vrot.slane %v223, 7
  %v292 = vrot.slane %v291, 2
  %v293 = vrot.slane %v225, 7
  %v294 = vrot.slane %v293, 2
  %v295 = vrot.slane %v233, 7
  %v296 = vrot.slane %v295, 2
  %v297 = vrot.slane %v241, 7
  %v298 = vrot.slane %v297, 2
  %v299 = vrot.slane %v240, 7
  %v300 = vrot.slane %v299, 2
  %v301 = vrot.slane %v242, 7
  %v302 = vrot.slane %v301, 2
  %v323 = vmax.f32 %v165, %v264
  %v324 = vmax.f32 %v173, %v266
  %v325 = vmax.f32 %v172, %v268
  %v326 = vmax.f32 %v174, %v270
  %v327 = vmax.f32 %v182, %v272
  %v328 = vmax.f32 %v190, %v274
  %v329 = vmax.f32 %v189, %v276
  %v330 = vmax.f32 %v191, %v278
  %v331 = vmax.f32 %v199, %v280
  %v332 = vmax.f32 %v207, %v282
  %v333 = vmax.f32 %v206, %v284
  %v334 = vmax.f32 %v208, %v286
  %v335 = vmax.f32 %v216, %v288
  %v336 = vmax.f32 %v224, %v290
  %v337 = vmax.f32 %v223, %v292
  %v338 = vmax.f32 %v225, %v294
  %v339 = vmax.f32 %v233, %v296
  %v340 = vmax.f32 %v241, %v298
  %v341 = vmax.f32 %v240, %v300
  %v342 = vmax.f32 %v242, %v302
  %v343 = vld [vmem:[%s7] sm:$0xff]
  %v344 = vld [vmem:[%s7 + $0x8] sm:$0xff]
  %v345 = vld [vmem:[%s7 + $0x10] sm:$0xf]
  %347 = vset.pattern.permute.xlu0 0
  %348 = vperm.xlu0 %347, %v343
  %v349 = vpop.permute.xlu0 %348
  %351 = vset.pattern.permute.xlu0 0
  %352 = vperm.xlu0 %351, %v344
  %v353 = vpop.permute.xlu0 %352
  %355 = vset.pattern.permute.xlu0 0
  %356 = vperm.xlu0 %355, %v345
  %v357 = vpop.permute.xlu0 %356
  %v359 = vunpack.c.l.s4 269488144
  %v360 = vunpack.c.0.s8 %v359
  %v361 = vlaneseq
  %v362 = vshrl.u32 %v361, 7
  %v363 = vsub.s32 %v360, %v362
  %v364 = vrot.slane %v349, %v363
  %v366 = vunpack.c.l.s4 842150450
  %v367 = vunpack.c.0.s8 %v366
  %v368 = vlaneseq
  %v369 = vshrl.u32 %v368, 7
  %v370 = vsub.s32 %v367, %v369
  %v371 = vrot.slane %v349, %v370
  %v373 = vunpack.c.l.s4 1414812756
  %v374 = vunpack.c.0.s8 %v373
  %v375 = vlaneseq
  %v376 = vshrl.u32 %v375, 7
  %v377 = vsub.s32 %v374, %v376
  %v378 = vrot.slane %v349, %v377
  %v380 = vunpack.c.l.s4 1987475062
  %v381 = vunpack.c.0.s8 %v380
  %v382 = vlaneseq
  %v383 = vshrl.u32 %v382, 7
  %v384 = vsub.s32 %v381, %v383
  %v385 = vrot.slane %v349, %v384
  %v387 = vunpack.c.l.s4 269488144
  %v388 = vunpack.c.0.s8 %v387
  %v389 = vlaneseq
  %v390 = vshrl.u32 %v389, 7
  %v391 = vsub.s32 %v388, %v390
  %v392 = vrot.slane %v353, %v391
  %v394 = vunpack.c.l.s4 842150450
  %v395 = vunpack.c.0.s8 %v394
  %v396 = vlaneseq
  %v397 = vshrl.u32 %v396, 7
  %v398 = vsub.s32 %v395, %v397
  %v399 = vrot.slane %v353, %v398
  %v401 = vunpack.c.l.s4 1414812756
  %v402 = vunpack.c.0.s8 %v401
  %v403 = vlaneseq
  %v404 = vshrl.u32 %v403, 7
  %v405 = vsub.s32 %v402, %v404
  %v406 = vrot.slane %v353, %v405
  %v408 = vunpack.c.l.s4 1987475062
  %v409 = vunpack.c.0.s8 %v408
  %v410 = vlaneseq
  %v411 = vshrl.u32 %v410, 7
  %v412 = vsub.s32 %v409, %v411
  %v413 = vrot.slane %v353, %v412
  %v415 = vunpack.c.l.s4 269488144
  %v416 = vunpack.c.0.s8 %v415
  %v417 = vlaneseq
  %v418 = vshrl.u32 %v417, 7
  %v419 = vsub.s32 %v416, %v418
  %v420 = vrot.slane %v357, %v419
  %v422 = vunpack.c.l.s4 842150450
  %v423 = vunpack.c.0.s8 %v422
  %v424 = vlaneseq
  %v425 = vshrl.u32 %v424, 7
  %v426 = vsub.s32 %v423, %v425
  %v427 = vrot.slane %v357, %v426
  %v428 = vrot.slane %v364, 1
  %v429 = vrot.slane %v371, 1
  %v430 = vrot.slane %v378, 1
  %v431 = vrot.slane %v385, 1
  %v432 = vrot.slane %v392, 1
  %v433 = vrot.slane %v399, 1
  %v434 = vrot.slane %v406, 1
  %v435 = vrot.slane %v413, 1
  %v436 = vrot.slane %v420, 1
  %v437 = vrot.slane %v427, 1
  %v458 = vmul.f32 %v323, %v364
  %v459 = vmul.f32 %v324, %v428
  %v460 = vmul.f32 %v325, %v371
  %v461 = vmul.f32 %v326, %v429
  %v462 = vmul.f32 %v327, %v378
  %v463 = vmul.f32 %v328, %v430
  %v464 = vmul.f32 %v329, %v385
  %v465 = vmul.f32 %v330, %v431
  %v466 = vmul.f32 %v331, %v392
  %v467 = vmul.f32 %v332, %v432
  %v468 = vmul.f32 %v333, %v399
  %v469 = vmul.f32 %v334, %v433
  %v470 = vmul.f32 %v335, %v406
  %v471 = vmul.f32 %v336, %v434
  %v472 = vmul.f32 %v337, %v413
  %v473 = vmul.f32 %v338, %v435
  %v474 = vmul.f32 %v339, %v420
  %v475 = vmul.f32 %v340, %v436
  %v476 = vmul.f32 %v341, %v427
  %v477 = vmul.f32 %v342, %v437
  %vm478 = vcmask 253952
  %479 = vst.msk [vmem:[#allocation2] sm:$0x1] %vm478, 0
  %v480 = vpack.c.bf16 %v458, %v458
  %v481 = vpack.c.bf16 %v459, %v459
  %v482 = vpack.c.bf16 %v460, %v460
  %v483 = vpack.c.bf16 %v461, %v461
  %v484 = vpack.c.bf16 %v462, %v462
  %v485 = vpack.c.bf16 %v463, %v463
  %v486 = vpack.c.bf16 %v464, %v464
  %v487 = vpack.c.bf16 %v465, %v465
  %v488 = vpack.c.bf16 %v466, %v466
  %v489 = vpack.c.bf16 %v467, %v467
  %v490 = vpack.c.bf16 %v468, %v468
  %v491 = vpack.c.bf16 %v469, %v469
  %v492 = vpack.c.bf16 %v470, %v470
  %v493 = vpack.c.bf16 %v471, %v471
  %v494 = vpack.c.bf16 %v472, %v472
  %v495 = vpack.c.bf16 %v473, %v473
  %v496 = vpack.c.bf16 %v474, %v474
  %v497 = vpack.c.bf16 %v475, %v475
  %v498 = vpack.c.bf16 %v476, %v476
  %v499 = vpack.c.bf16 %v477, %v477
  %v520 = vunpack.c.l.b16 %v480
  %v521 = vunpack.c.l.b16 %v481
  %v522 = vunpack.c.l.b16 %v482
  %v523 = vunpack.c.l.b16 %v483
  %v524 = vunpack.c.l.b16 %v484
  %v525 = vunpack.c.l.b16 %v485
  %v526 = vunpack.c.l.b16 %v486
  %v527 = vunpack.c.l.b16 %v487
  %v528 = vunpack.c.l.b16 %v488
  %v529 = vunpack.c.l.b16 %v489
  %v530 = vunpack.c.l.b16 %v490
  %v531 = vunpack.c.l.b16 %v491
  %v532 = vunpack.c.l.b16 %v492
  %v533 = vunpack.c.l.b16 %v493
  %v534 = vunpack.c.l.b16 %v494
  %v535 = vunpack.c.l.b16 %v495
  %v536 = vunpack.c.l.b16 %v496
  %v537 = vunpack.c.l.b16 %v497
  %v538 = vunpack.c.l.b16 %v498
  %v539 = vunpack.c.l.b16 %v499
  %v540 = vpack.c.b16 %v520, %v520
  %v541 = vpack.c.b16 %v521, %v521
  %v542 = vpack.c.b16 %v522, %v522
  %v543 = vpack.c.b16 %v523, %v523
  %v544 = vpack.c.b16 %v524, %v524
  %v545 = vpack.c.b16 %v525, %v525
  %v546 = vpack.c.b16 %v526, %v526
  %v547 = vpack.c.b16 %v527, %v527
  %v548 = vpack.c.b16 %v528, %v528
  %v549 = vpack.c.b16 %v529, %v529
  %v550 = vpack.c.b16 %v530, %v530
  %v551 = vpack.c.b16 %v531, %v531
  %v552 = vpack.c.b16 %v532, %v532
  %v553 = vpack.c.b16 %v533, %v533
  %v554 = vpack.c.b16 %v534, %v534
  %v555 = vpack.c.b16 %v535, %v535
  %v556 = vpack.c.b16 %v536, %v536
  %v557 = vpack.c.b16 %v537, %v537
  %v558 = vpack.c.b16 %v538, %v538
  %v559 = vpack.c.b16 %v539, %v539
  %v560 = vunpack.c.l.b16 %v540
  %v561 = vunpack.c.l.b16 %v541
  %v562 = vunpack.c.l.b16 %v542
  %v563 = vunpack.c.l.b16 %v543
  %v564 = vunpack.c.l.b16 %v544
  %v565 = vunpack.c.l.b16 %v545
  %v566 = vunpack.c.l.b16 %v546
  %v567 = vunpack.c.l.b16 %v547
  %v568 = vunpack.c.l.b16 %v548
  %v569 = vunpack.c.l.b16 %v549
  %v570 = vunpack.c.l.b16 %v550
  %v571 = vunpack.c.l.b16 %v551
  %v572 = vunpack.c.l.b16 %v552
  %v573 = vunpack.c.l.b16 %v553
  %v574 = vunpack.c.l.b16 %v554
  %v575 = vunpack.c.l.b16 %v555
  %v576 = vunpack.c.l.b16 %v556
  %v577 = vunpack.c.l.b16 %v557
  %v578 = vunpack.c.l.b16 %v558
  %v579 = vunpack.c.l.b16 %v559
  %v580 = vrot.slane %v560, 6
  %v581 = vrot.slane %v561, 5
  %vm582 = vcmask 1043459
  %v583 = vsel %vm582, %v581, %v580
  %v584 = vrot.slane %v562, 4
  %vm585 = vcmask 1044484
  %v586 = vsel %vm585, %v584, %v583
  %v587 = vrot.slane %v563, 3
  %vm588 = vcmask 1045509
  %v589 = vsel %vm588, %v587, %v586
  %v590 = vrot.slane %v564, 2
  %vm591 = vcmask 1046534
  %v592 = vsel %vm591, %v590, %v589
  %v593 = vrot.slane %v565, 1
  %vm594 = vcmask 1047559
  %v595 = vsel %vm594, %v593, %v592
  %v596 = vrot.slane %v567, 7
  %vm597 = vcmask 1041409
  %v598 = vsel %vm597, %v596, %v566
  %v599 = vrot.slane %v568, 6
  %vm600 = vcmask 1042434
  %v601 = vsel %vm600, %v599, %v598
  %v602 = vrot.slane %v569, 5
  %v603 = vsel %vm582, %v602, %v601
  %v604 = vrot.slane %v570, 4
  %v605 = vsel %vm585, %v604, %v603
  %v606 = vrot.slane %v571, 3
  %v607 = vsel %vm588, %v606, %v605
  %v608 = vrot.slane %v572, 2
  %v609 = vsel %vm591, %v608, %v607
  %v610 = vrot.slane %v573, 1
  %v611 = vsel %vm594, %v610, %v609
  %v612 = vrot.slane %v575, 7
  %v613 = vsel %vm597, %v612, %v574
  %v614 = vrot.slane %v576, 6
  %v615 = vsel %vm600, %v614, %v613
  %v616 = vrot.slane %v577, 5
  %v617 = vsel %vm582, %v616, %v615
  %v618 = vrot.slane %v578, 4
  %v619 = vsel %vm585, %v618, %v617
  %v620 = vrot.slane %v579, 3
  %v621 = vsel %vm588, %v620, %v619
  %v622 = vpack.c.b16 %v595, %v595
  %v623 = vpack.c.b16 %v611, %v611
  %v624 = vpack.c.b16 %v621, %v621
  %vm628 = vcmask 257025
  %629 = vst.msk [vmem:[#allocation2] sm:$0xe] %vm628, %v622
  %vm630 = vcmask 257024
  %631 = vst.msk [vmem:[#allocation2 + $0x4] sm:$0xf] %vm630, %v623
  %vm632 = vcmask 256000
  %633 = vst.msk [vmem:[#allocation2 + $0x8] sm:$0x7] %vm632, %v624
  %v634 = vld [vmem:[#allocation2] sm:$0xf]
  %v635 = vld [vmem:[#allocation2 + $0x4] sm:$0xf]
  %v636 = vld [vmem:[#allocation2 + $0x8] sm:$0x1]
  %v637 = vld [vmem:[#allocation2 + $0x8] sm:$0x3]
  %v638 = vld [vmem:[#allocation2] sm:$0xe]
  %v639 = vld [vmem:[#allocation2 + $0x8] sm:$0x7]
  %v640 = vld [vmem:[#allocation2] sm:$0xc]
  %v644 = vunpack.c.l.b16 %v634
  %v645 = vunpack.c.l.b16 %v635
  %v646 = vunpack.c.l.b16 %v636
  %v647 = vpack.c.b16 %v645, %v644
  %v648 = vpack.c.b16 %v646, %v646
  %v650 = vunpack.c.l.b16 %v637
  %v651 = vpack.c.b16 %v650, %v650
  %vm652 = vsmask.f32 7424
  %v654 = vshrl.u32 %v647, 16
  %v656 = vshll.u32 %v647, 16
  %v658 = vrot.slane %v656, 1
  %v659 = vor.u32 %v654, %v658
  %v661 = vshll.u32 %v651, 16
  %v663 = vrot.slane %v661, 1
  %v664 = vsel %vm652, %v659, %v663
  %v665 = vshrl.u32 %v651, 16
  %v667 = vor.u32 %v665, %v663
  %668 = vrot.lane.b32.xlu0 %v664, 32
  %v669 = vpop.permute.xlu0 %668
  %670 = vrot.lane.b32.xlu0 %v667, 32
  %v671 = vpop.permute.xlu0 %670
  %v673 = vunpack.c.l.b16 %v638
  %v674 = vpack.c.b16 %v645, %v673
  %vm675 = vcmask 1046528
  %v676 = vrot.slane %v674, 1
  %v677 = vrot.slane %v651, 1
  %v678 = vsel %vm675, %v676, %v677
  %679 = vrot.lane.b32.xlu0 %v678, 64
  %v680 = vpop.permute.xlu0 %679
  %681 = vrot.lane.b32.xlu0 %v677, 64
  %v682 = vpop.permute.xlu0 %681
  %v684 = vunpack.c.l.b16 %v639
  %v685 = vpack.c.b16 %v684, %v684
  %vm686 = vsmask.f32 6400
  %v688 = vshrl.u32 %v674, 16
  %v690 = vrot.slane %v688, 1
  %v691 = vshll.u32 %v674, 16
  %v693 = vrot.slane %v691, 2
  %v694 = vor.u32 %v690, %v693
  %v696 = vshrl.u32 %v685, 16
  %v698 = vrot.slane %v696, 1
  %v699 = vshll.u32 %v685, 16
  %v701 = vrot.slane %v699, 2
  %v702 = vor.u32 %v698, %v701
  %v703 = vsel %vm686, %v694, %v702
  %704 = vrot.lane.b32.xlu0 %v703, 96
  %v705 = vpop.permute.xlu0 %704
  %706 = vrot.lane.b32.xlu0 %v702, 96
  %v707 = vpop.permute.xlu0 %706
  %v709 = vunpack.c.l.b16 %v640
  %v710 = vpack.c.b16 %v645, %v709
  %vm711 = vcmask 1045504
  %v712 = vrot.slane %v710, 2
  %v713 = vrot.slane %v685, 2
  %v714 = vsel %vm711, %v712, %v713
  %vm715 = vcmask 261120
  %v717 = vsel %vm715, %v647, %v669
  %v720 = vsel %vm715, %v648, %v671
  %vm721 = vcmask 523264
  %v723 = vsel %vm721, %v717, %v680
  %v725 = vsel %vm721, %v720, %v682
  %vm726 = vcmask 785408
  %v728 = vsel %vm726, %v723, %v705
  %v731 = vsel %vm726, %v725, %v707
  %v733 = vld [vmem:[%s3] sm:$0xf]
  %v734 = vld [vmem:[%s3 + $0x4] sm:$0xf]
  %v735 = vld [vmem:[%s3 + $0x8] sm:$0xf]
  %v736 = vld [vmem:[%s3 + $0xc] sm:$0xf]
  %v737 = vld [vmem:[%s3 + $0x10] sm:$0xf]
  %v738 = vld [vmem:[%s3 + $0x14] sm:$0xf]
  %v739 = vld [vmem:[%s3 + $0x18] sm:$0xf]
  %v740 = vld [vmem:[%s3 + $0x1c] sm:$0xf]
  %v741 = vld [vmem:[%s3 + $0x20] sm:$0xf]
  %v742 = vld [vmem:[%s3 + $0x24] sm:$0xf]
  %v743 = vld [vmem:[%s3 + $0x28] sm:$0xf]
  %v744 = vld [vmem:[%s3 + $0x2c] sm:$0xf]
  %v745 = vld [vmem:[%s3 + $0x30] sm:$0xf]
  %v746 = vld [vmem:[%s3 + $0x34] sm:$0xf]
  %v747 = vld [vmem:[%s3 + $0x38] sm:$0xf]
  %v748 = vld [vmem:[%s3 + $0x3c] sm:$0xf]
  %v749 = vld [vmem:[%s3 + $0x40] sm:$0xf]
  %v750 = vld [vmem:[%s3 + $0x44] sm:$0xf]
  %v751 = vld [vmem:[%s3 + $0x48] sm:$0xf]
  %v752 = vld [vmem:[%s3 + $0x4c] sm:$0xf]
  %v753 = vld [vmem:[%s4] sm:$0x1]
  %v755 = vlaneseq
  %v756 = vshrl.u32 %v755, 7
  %v757 = vsub.s32 0, %v756
  %v758 = vrot.slane %v753, %v757
  %v780 = vunpack.c.l.b16 %v733
  %v781 = vunpack.c.l.b16 %v734
  %v782 = vunpack.c.l.b16 %v735
  %v783 = vunpack.c.l.b16 %v736
  %v784 = vunpack.c.l.b16 %v737
  %v785 = vunpack.c.l.b16 %v738
  %v786 = vunpack.c.l.b16 %v739
  %v787 = vunpack.c.l.b16 %v740
  %v788 = vunpack.c.l.b16 %v741
  %v789 = vunpack.c.l.b16 %v742
  %v790 = vunpack.c.l.b16 %v743
  %v791 = vunpack.c.l.b16 %v744
  %v792 = vunpack.c.l.b16 %v745
  %v793 = vunpack.c.l.b16 %v746
  %v794 = vunpack.c.l.b16 %v747
  %v795 = vunpack.c.l.b16 %v748
  %v796 = vunpack.c.l.b16 %v749
  %v797 = vunpack.c.l.b16 %v750
  %v798 = vunpack.c.l.b16 %v751
  %v799 = vunpack.c.l.b16 %v752
  %v800 = vpack.c.b16 %v781, %v780
  %v801 = vpack.c.b16 %v783, %v782
  %v802 = vpack.c.b16 %v785, %v784
  %v803 = vpack.c.b16 %v787, %v786
  %v804 = vpack.c.b16 %v789, %v788
  %v805 = vpack.c.b16 %v791, %v790
  %v806 = vpack.c.b16 %v793, %v792
  %v807 = vpack.c.b16 %v795, %v794
  %v808 = vpack.c.b16 %v797, %v796
  %v809 = vpack.c.b16 %v799, %v798
  %v821 = vsel %vm715, %v714, 0
  %v824 = vsel %vm715, %v713, 0
  %826 = vmatprep.subr.bf16.mxu0 0
  %827 = vmatpush1.bf16.msra.mxu0 %v807
  %828 = vmatprep.subr.bf16.mxu0 0
  %829 = vmatpush1.bf16.msra.mxu0 %v806
  %830 = vmatprep.subr.bf16.mxu0 0
  %831 = vmatpush1.bf16.msra.mxu0 %v805
  %832 = vmatprep.subr.bf16.mxu0 0
  %833 = vmatpush1.bf16.msra.mxu0 %v804
  %834 = vmatprep.subr.bf16.mxu0 0
  %835 = vmatpush1.bf16.msra.mxu0 %v803
  %836 = vmatprep.subr.bf16.mxu0 0
  %837 = vmatpush1.bf16.msra.mxu0 %v802
  %838 = vmatprep.subr.bf16.mxu0 0
  %839 = vmatpush1.bf16.msra.mxu0 %v801
  %840 = vmatprep.subr.bf16.mxu0 0
  %841 = vmatpush1.bf16.msra.mxu0 %v800
  %842 = vmatprep.subr.bf16.mxu0 0
  %843 = vmatpush2.bf16.msra.mxu0 0
  %844 = vmatprep.subr.bf16.mxu0 0
  %845 = vmatpush2.bf16.msra.mxu0 0
  %846 = vmatprep.subr.bf16.mxu0 0
  %847 = vmatpush2.bf16.msra.mxu0 0
  %848 = vmatprep.subr.bf16.mxu0 0
  %849 = vmatpush2.bf16.msra.mxu0 0
  %850 = vmatprep.subr.bf16.mxu0 0
  %851 = vmatpush2.bf16.msra.mxu0 0
  %852 = vmatprep.subr.bf16.mxu0 0
  %853 = vmatpush2.bf16.msra.mxu0 0
  %854 = vmatprep.subr.bf16.mxu0 0
  %855 = vmatpush2.bf16.msra.mxu0 %v809
  %856 = vmatprep.subr.bf16.mxu0 0
  %857 = vmatpush2.bf16.msra.mxu0 %v808
  %858 = vmatprep.mubr.bf16.mxu0 %v821
  %859 = vmatmul.mubr.bf16.gmra.mxu0 %v728
  %v860 = vpop.f32.mrf.mxu0
  %v861 = vadd.f32 %v758, %v860
  %v862 = vpop.f32.mrf.mxu0
  %v863 = vpop.f32.mrf.mxu0
  %v864 = vadd.f32 %v758, %v863
  %v865 = vpop.f32.mrf.mxu0
  %866 = vmatprep.mubr.bf16.mxu0 %v824
  %867 = vmatmul.mubr.bf16.gmra.mxu0 %v731
  %v868 = vpop.f32.mrf.mxu0
  %v869 = vadd.f32 %v758, %v868
  %v870 = vpop.f32.mrf.mxu0
  %v871 = vpop.f32.mrf.mxu0
  %v872 = vpop.f32.mrf.mxu0
  %873 = vdwg.mxu0
  %v874 = vmax.f32 %v861, 0.0
  %v875 = vmax.f32 %v864, 0.0
  %v876 = vmax.f32 %v869, 0.0
  %v880 = vcombine.high %v874, %v874
  %v882 = vunpack.c.l.s4 1983009808
  %v883 = vunpack.c.0.s8 %v882
  %v884 = vlaneseq
  %v885 = vshrl.u32 %v884, 7
  %v886 = vsub.s32 %v883, %v885
  %v887 = vrot.slane %v874, %v886
  %v889 = vunpack.c.l.s4 1983009808
  %v890 = vunpack.c.0.s8 %v889
  %v891 = vlaneseq
  %v892 = vshrl.u32 %v891, 7
  %v893 = vsub.s32 %v890, %v892
  %v894 = vrot.slane %v880, %v893
  %v895 = vcombine.high %v887, %v887
  %v896 = vcombine.high %v894, %v894
  %v897 = vcombine.high %v875, %v875
  %v899 = vunpack.c.l.s4 1983009808
  %v900 = vunpack.c.0.s8 %v899
  %v901 = vlaneseq
  %v902 = vshrl.u32 %v901, 7
  %v903 = vsub.s32 %v900, %v902
  %v904 = vrot.slane %v875, %v903
  %v906 = vunpack.c.l.s4 1983009808
  %v907 = vunpack.c.0.s8 %v906
  %v908 = vlaneseq
  %v909 = vshrl.u32 %v908, 7
  %v910 = vsub.s32 %v907, %v909
  %v911 = vrot.slane %v897, %v910
  %v912 = vcombine.high %v904, %v904
  %v913 = vcombine.high %v911, %v911
  %v915 = vunpack.c.l.s4 1983009808
  %v916 = vunpack.c.0.s8 %v915
  %v917 = vlaneseq
  %v918 = vshrl.u32 %v917, 7
  %v919 = vsub.s32 %v916, %v918
  %v920 = vrot.slane %v876, %v919
  %v930 = vrot.slane %v887, 7
  %v931 = vrot.slane %v930, 2
  %v932 = vrot.slane %v895, 7
  %v933 = vrot.slane %v932, 2
  %v934 = vrot.slane %v894, 7
  %v935 = vrot.slane %v934, 2
  %v936 = vrot.slane %v896, 7
  %v937 = vrot.slane %v936, 2
  %v938 = vrot.slane %v904, 7
  %v939 = vrot.slane %v938, 2
  %v940 = vrot.slane %v912, 7
  %v941 = vrot.slane %v940, 2
  %v942 = vrot.slane %v911, 7
  %v943 = vrot.slane %v942, 2
  %v944 = vrot.slane %v913, 7
  %v945 = vrot.slane %v944, 2
  %v946 = vrot.slane %v920, 7
  %v947 = vrot.slane %v946, 2
  %v957 = vmax.f32 %v887, %v931
  %v958 = vmax.f32 %v895, %v933
  %v959 = vmax.f32 %v894, %v935
  %v960 = vmax.f32 %v896, %v937
  %v961 = vmax.f32 %v904, %v939
  %v962 = vmax.f32 %v912, %v941
  %v963 = vmax.f32 %v911, %v943
  %v964 = vmax.f32 %v913, %v945
  %v965 = vmax.f32 %v920, %v947
  %v966 = vld [vmem:[%s8] sm:$0xff]
  %v967 = vld [vmem:[%s8 + $0x8] sm:$0x1]
  %969 = vset.pattern.permute.xlu0 0
  %970 = vperm.xlu0 %969, %v966
  %v971 = vpop.permute.xlu0 %970
  %973 = vset.pattern.permute.xlu0 0
  %974 = vperm.xlu0 %973, %v967
  %v975 = vpop.permute.xlu0 %974
  %v977 = vunpack.c.l.s4 269488144
  %v978 = vunpack.c.0.s8 %v977
  %v979 = vlaneseq
  %v980 = vshrl.u32 %v979, 7
  %v981 = vsub.s32 %v978, %v980
  %v982 = vrot.slane %v971, %v981
  %v984 = vunpack.c.l.s4 842150450
  %v985 = vunpack.c.0.s8 %v984
  %v986 = vlaneseq
  %v987 = vshrl.u32 %v986, 7
  %v988 = vsub.s32 %v985, %v987
  %v989 = vrot.slane %v971, %v988
  %v991 = vunpack.c.l.s4 1414812756
  %v992 = vunpack.c.0.s8 %v991
  %v993 = vlaneseq
  %v994 = vshrl.u32 %v993, 7
  %v995 = vsub.s32 %v992, %v994
  %v996 = vrot.slane %v971, %v995
  %v998 = vunpack.c.l.s4 1987475062
  %v999 = vunpack.c.0.s8 %v998
  %v1000 = vlaneseq
  %v1001 = vshrl.u32 %v1000, 7
  %v1002 = vsub.s32 %v999, %v1001
  %v1003 = vrot.slane %v971, %v1002
  %v1005 = vunpack.c.l.s4 269488144
  %v1006 = vunpack.c.0.s8 %v1005
  %v1007 = vlaneseq
  %v1008 = vshrl.u32 %v1007, 7
  %v1009 = vsub.s32 %v1006, %v1008
  %v1010 = vrot.slane %v975, %v1009
  %v1011 = vrot.slane %v982, 1
  %v1012 = vrot.slane %v989, 1
  %v1013 = vrot.slane %v996, 1
  %v1014 = vrot.slane %v1003, 1
  %v1024 = vmul.f32 %v957, %v982
  %v1025 = vmul.f32 %v958, %v1011
  %v1026 = vmul.f32 %v959, %v989
  %v1027 = vmul.f32 %v960, %v1012
  %v1028 = vmul.f32 %v961, %v996
  %v1029 = vmul.f32 %v962, %v1013
  %v1030 = vmul.f32 %v963, %v1003
  %v1031 = vmul.f32 %v964, %v1014
  %v1032 = vmul.f32 %v965, %v1010
  %vm1033 = vcmask 516096
  %vm1034 = vsmask.f32 256
  %vm1035 = vmand %vm1033, %vm1034
  %v1036 = vld [vmem:[#allocation3] sm:$0x1]
  %v1037 = vsel %vm1035, 0, %v1036
  %1038 = vst [vmem:[#allocation3] sm:$0x1] %v1037
  %v1039 = vpack.c.bf16 %v1024, %v1024
  %v1040 = vpack.c.bf16 %v1025, %v1025
  %v1041 = vpack.c.bf16 %v1026, %v1026
  %v1042 = vpack.c.bf16 %v1027, %v1027
  %v1043 = vpack.c.bf16 %v1028, %v1028
  %v1044 = vpack.c.bf16 %v1029, %v1029
  %v1045 = vpack.c.bf16 %v1030, %v1030
  %v1046 = vpack.c.bf16 %v1031, %v1031
  %v1047 = vpack.c.bf16 %v1032, %v1032
  %v1057 = vunpack.c.l.b16 %v1039
  %v1058 = vunpack.c.l.b16 %v1040
  %v1059 = vunpack.c.l.b16 %v1041
  %v1060 = vunpack.c.l.b16 %v1042
  %v1061 = vunpack.c.l.b16 %v1043
  %v1062 = vunpack.c.l.b16 %v1044
  %v1063 = vunpack.c.l.b16 %v1045
  %v1064 = vunpack.c.l.b16 %v1046
  %v1065 = vunpack.c.l.b16 %v1047
  %v1066 = vpack.c.b16 %v1057, %v1057
  %v1067 = vpack.c.b16 %v1058, %v1058
  %v1068 = vpack.c.b16 %v1059, %v1059
  %v1069 = vpack.c.b16 %v1060, %v1060
  %v1070 = vpack.c.b16 %v1061, %v1061
  %v1071 = vpack.c.b16 %v1062, %v1062
  %v1072 = vpack.c.b16 %v1063, %v1063
  %v1073 = vpack.c.b16 %v1064, %v1064
  %v1074 = vpack.c.b16 %v1065, %v1065
  %v1075 = vunpack.c.l.b16 %v1066
  %v1076 = vunpack.c.l.b16 %v1067
  %v1077 = vunpack.c.l.b16 %v1068
  %v1078 = vunpack.c.l.b16 %v1069
  %v1079 = vunpack.c.l.b16 %v1070
  %v1080 = vunpack.c.l.b16 %v1071
  %v1081 = vunpack.c.l.b16 %v1072
  %v1082 = vunpack.c.l.b16 %v1073
  %v1083 = vunpack.c.l.b16 %v1074
  %v1084 = vrot.slane %v1075, 7
  %v1085 = vrot.slane %v1076, 6
  %v1086 = vsel %vm600, %v1085, %v1084
  %v1087 = vrot.slane %v1077, 5
  %v1088 = vsel %vm582, %v1087, %v1086
  %v1089 = vrot.slane %v1078, 4
  %v1090 = vsel %vm585, %v1089, %v1088
  %v1091 = vrot.slane %v1079, 3
  %v1092 = vsel %vm588, %v1091, %v1090
  %v1093 = vrot.slane %v1080, 2
  %v1094 = vsel %vm591, %v1093, %v1092
  %v1095 = vrot.slane %v1081, 1
  %v1096 = vsel %vm594, %v1095, %v1094
  %v1097 = vrot.slane %v1083, 7
  %v1098 = vsel %vm597, %v1097, %v1082
  %v1099 = vpack.c.b16 %v1096, %v1096
  %v1100 = vpack.c.b16 %v1098, %v1098
  %vm1103 = vcmask 519168
  %vm1104 = vsmask.f32 7938
  %vm1105 = vmand %vm1103, %vm1104
  %v1106 = vld [vmem:[#allocation3] sm:$0xf]
  %v1107 = vsel %vm1105, %v1099, %v1106
  %1108 = vst [vmem:[#allocation3] sm:$0xf] %v1107
  %vm1109 = vcmask 516096
  %1110 = vst.msk [vmem:[#allocation3 + $0x4] sm:$0x1] %vm1109, %v1100
  %vm1111 = vcmask 517121
  %1112 = vst.msk [vmem:[#allocation3 + $0x4] sm:$0x2] %vm1111, 0
  %v1113 = vld [vmem:[#allocation3] sm:$0xf]
  %v1114 = vld [vmem:[#allocation3 + $0x4] sm:$0x1]
  %v1115 = vld [vmem:[#allocation3 + $0x4] sm:$0x3]
  %v1116 = vld [vmem:[#allocation3] sm:$0xe]
  %v1119 = vunpack.c.l.b16 %v1113
  %v1120 = vunpack.c.l.b16 %v1114
  %v1121 = vpack.c.b16 %v1120, %v1119
  %v1123 = vunpack.c.l.b16 %v1115
  %v1124 = vpack.c.b16 %v1123, %v1119
  %v1126 = vshrl.u32 %v1124, 16
  %v1128 = vshll.u32 %v1124, 16
  %v1130 = vrot.slane %v1128, 1
  %v1131 = vor.u32 %v1126, %v1130
  %1132 = vrot.lane.b32.xlu0 %v1131, 64
  %v1133 = vpop.permute.xlu0 %1132
  %v1135 = vunpack.c.l.b16 %v1116
  %v1136 = vpack.c.b16 %v1123, %v1135
  %v1137 = vrot.slane %v1136, 1
  %v1140 = vsel %vm721, %v1121, %v1133
  %v1142 = vld [vmem:[%s5] sm:$0xf]
  %v1143 = vld [vmem:[%s5 + $0x4] sm:$0xf]
  %v1144 = vld [vmem:[%s5 + $0x8] sm:$0xf]
  %v1145 = vld [vmem:[%s5 + $0xc] sm:$0xf]
  %v1146 = vld [vmem:[%s5 + $0x10] sm:$0xf]
  %v1147 = vld [vmem:[%s5 + $0x14] sm:$0xf]
  %v1148 = vld [vmem:[%s5 + $0x18] sm:$0xf]
  %v1149 = vld [vmem:[%s5 + $0x1c] sm:$0xf]
  %v1150 = vld [vmem:[%s5 + $0x20] sm:$0xf]
  %v1151 = vld [vmem:[%s5 + $0x24] sm:$0xf]
  %v1152 = vld [vmem:[%s5 + $0x28] sm:$0xf]
  %v1153 = vld [vmem:[%s5 + $0x2c] sm:$0xf]
  %v1154 = vld [vmem:[%s5 + $0x30] sm:$0xf]
  %v1155 = vld [vmem:[%s5 + $0x34] sm:$0xf]
  %v1156 = vld [vmem:[%s5 + $0x38] sm:$0xf]
  %v1157 = vld [vmem:[%s5 + $0x3c] sm:$0xf]
  %v1158 = vld [vmem:[%s5 + $0x40] sm:$0xf]
  %v1159 = vld [vmem:[%s5 + $0x44] sm:$0xf]
  %v1160 = vld [vmem:[%s5 + $0x48] sm:$0xf]
  %v1161 = vld [vmem:[%s5 + $0x4c] sm:$0xf]
  %v1162 = vld [vmem:[%s5 + $0x50] sm:$0xf]
  %v1163 = vld [vmem:[%s5 + $0x54] sm:$0xf]
  %v1164 = vld [vmem:[%s5 + $0x58] sm:$0xf]
  %v1165 = vld [vmem:[%s5 + $0x5c] sm:$0xf]
  %v1166 = vld [vmem:[%s6] sm:$0x1]
  %v1168 = vlaneseq
  %v1169 = vshrl.u32 %v1168, 7
  %v1170 = vsub.s32 0, %v1169
  %v1171 = vrot.slane %v1166, %v1170
  %v1197 = vunpack.c.l.b16 %v1142
  %v1198 = vunpack.c.l.b16 %v1143
  %v1199 = vunpack.c.l.b16 %v1144
  %v1200 = vunpack.c.l.b16 %v1145
  %v1201 = vunpack.c.l.b16 %v1146
  %v1202 = vunpack.c.l.b16 %v1147
  %v1203 = vunpack.c.l.b16 %v1148
  %v1204 = vunpack.c.l.b16 %v1149
  %v1205 = vunpack.c.l.b16 %v1150
  %v1206 = vunpack.c.l.b16 %v1151
  %v1207 = vunpack.c.l.b16 %v1152
  %v1208 = vunpack.c.l.b16 %v1153
  %v1209 = vunpack.c.l.b16 %v1154
  %v1210 = vunpack.c.l.b16 %v1155
  %v1211 = vunpack.c.l.b16 %v1156
  %v1212 = vunpack.c.l.b16 %v1157
  %v1213 = vunpack.c.l.b16 %v1158
  %v1214 = vunpack.c.l.b16 %v1159
  %v1215 = vunpack.c.l.b16 %v1160
  %v1216 = vunpack.c.l.b16 %v1161
  %v1217 = vunpack.c.l.b16 %v1162
  %v1218 = vunpack.c.l.b16 %v1163
  %v1219 = vunpack.c.l.b16 %v1164
  %v1220 = vunpack.c.l.b16 %v1165
  %v1221 = vpack.c.b16 %v1198, %v1197
  %v1222 = vpack.c.b16 %v1200, %v1199
  %v1223 = vpack.c.b16 %v1202, %v1201
  %v1224 = vpack.c.b16 %v1204, %v1203
  %v1225 = vpack.c.b16 %v1206, %v1205
  %v1226 = vpack.c.b16 %v1208, %v1207
  %v1227 = vpack.c.b16 %v1210, %v1209
  %v1228 = vpack.c.b16 %v1212, %v1211
  %v1229 = vpack.c.b16 %v1214, %v1213
  %v1230 = vpack.c.b16 %v1216, %v1215
  %v1231 = vpack.c.b16 %v1218, %v1217
  %v1232 = vpack.c.b16 %v1220, %v1219
  %v1246 = vsel %vm721, %v1137, 0
  %1248 = vmatprep.subr.bf16.mxu0 0
  %1249 = vmatpush1.bf16.msra.mxu0 %v1228
  %1250 = vmatprep.subr.bf16.mxu0 0
  %1251 = vmatpush1.bf16.msra.mxu0 %v1227
  %1252 = vmatprep.subr.bf16.mxu0 0
  %1253 = vmatpush1.bf16.msra.mxu0 %v1226
  %1254 = vmatprep.subr.bf16.mxu0 0
  %1255 = vmatpush1.bf16.msra.mxu0 %v1225
  %1256 = vmatprep.subr.bf16.mxu0 0
  %1257 = vmatpush1.bf16.msra.mxu0 %v1224
  %1258 = vmatprep.subr.bf16.mxu0 0
  %1259 = vmatpush1.bf16.msra.mxu0 %v1223
  %1260 = vmatprep.subr.bf16.mxu0 0
  %1261 = vmatpush1.bf16.msra.mxu0 %v1222
  %1262 = vmatprep.subr.bf16.mxu0 0
  %1263 = vmatpush1.bf16.msra.mxu0 %v1221
  %1264 = vmatprep.subr.bf16.mxu0 0
  %1265 = vmatpush2.bf16.msra.mxu0 0
  %1266 = vmatprep.subr.bf16.mxu0 0
  %1267 = vmatpush2.bf16.msra.mxu0 0
  %1268 = vmatprep.subr.bf16.mxu0 0
  %1269 = vmatpush2.bf16.msra.mxu0 0
  %1270 = vmatprep.subr.bf16.mxu0 0
  %1271 = vmatpush2.bf16.msra.mxu0 0
  %1272 = vmatprep.subr.bf16.mxu0 0
  %1273 = vmatpush2.bf16.msra.mxu0 %v1232
  %1274 = vmatprep.subr.bf16.mxu0 0
  %1275 = vmatpush2.bf16.msra.mxu0 %v1231
  %1276 = vmatprep.subr.bf16.mxu0 0
  %1277 = vmatpush2.bf16.msra.mxu0 %v1230
  %1278 = vmatprep.subr.bf16.mxu0 0
  %1279 = vmatpush2.bf16.msra.mxu0 %v1229
  %1280 = vmatprep.mubr.bf16.mxu0 %v1246
  %1281 = vmatmul.mubr.bf16.gmra.mxu0 %v1140
  %v1282 = vpop.f32.mrf.mxu0
  %v1283 = vadd.f32 %v1171, %v1282
  %v1284 = vpop.f32.mrf.mxu0
  %v1285 = vpop.f32.mrf.mxu0
  %v1286 = vadd.f32 %v1171, %v1285
  %v1287 = vpop.f32.mrf.mxu0
  %1288 = vdwg.mxu0
  %v1289 = vmax.f32 %v1283, 0.0
  %v1290 = vmax.f32 %v1286, 0.0
  %v1291 = vld [vmem:[%s8] sm:$0xff]
  %v1292 = vld [vmem:[%s8 + $0x8] sm:$0x3]
  %1294 = vset.pattern.permute.xlu0 0
  %1295 = vperm.xlu0 %1294, %v1291
  %v1296 = vpop.permute.xlu0 %1295
  %1299 = vset.pattern.permute.xlu0 0
  %1300 = vperm.xlu0 %1299, %v1292
  %v1301 = vpop.permute.xlu0 %1300
  %v1303 = vmul.f32 %v1289, %v1296
  %v1304 = vmul.f32 %v1290, %v1301
  %v1307 = vcombine.high %v1303, %v1303
  %v1309 = vunpack.c.l.s4 1966171168
  %v1310 = vunpack.c.0.s8 %v1309
  %v1311 = vlaneseq
  %v1312 = vshrl.u32 %v1311, 7
  %v1313 = vsub.s32 %v1310, %v1312
  %v1314 = vrot.slane %v1303, %v1313
  %v1316 = vunpack.c.l.s4 1966171168
  %v1317 = vunpack.c.0.s8 %v1316
  %v1318 = vlaneseq
  %v1319 = vshrl.u32 %v1318, 7
  %v1320 = vsub.s32 %v1317, %v1319
  %v1321 = vrot.slane %v1307, %v1320
  %v1322 = vcombine.high %v1314, %v1314
  %v1323 = vcombine.high %v1321, %v1321
  %v1325 = vunpack.c.l.s4 1966171168
  %v1326 = vunpack.c.0.s8 %v1325
  %v1327 = vlaneseq
  %v1328 = vshrl.u32 %v1327, 7
  %v1329 = vsub.s32 %v1326, %v1328
  %v1330 = vrot.slane %v1314, %v1329
  %v1332 = vunpack.c.l.s4 1966171168
  %v1333 = vunpack.c.0.s8 %v1332
  %v1334 = vlaneseq
  %v1335 = vshrl.u32 %v1334, 7
  %v1336 = vsub.s32 %v1333, %v1335
  %v1337 = vrot.slane %v1321, %v1336
  %v1339 = vunpack.c.l.s4 1966171168
  %v1340 = vunpack.c.0.s8 %v1339
  %v1341 = vlaneseq
  %v1342 = vshrl.u32 %v1341, 7
  %v1343 = vsub.s32 %v1340, %v1342
  %v1344 = vrot.slane %v1322, %v1343
  %v1346 = vunpack.c.l.s4 1966171168
  %v1347 = vunpack.c.0.s8 %v1346
  %v1348 = vlaneseq
  %v1349 = vshrl.u32 %v1348, 7
  %v1350 = vsub.s32 %v1347, %v1349
  %v1351 = vrot.slane %v1323, %v1350
  %v1352 = vcombine.high %v1330, %v1330
  %v1353 = vcombine.high %v1337, %v1337
  %v1354 = vcombine.high %v1344, %v1344
  %v1355 = vcombine.high %v1351, %v1351
  %v1357 = vunpack.c.l.s4 1966171168
  %v1358 = vunpack.c.0.s8 %v1357
  %v1359 = vlaneseq
  %v1360 = vshrl.u32 %v1359, 7
  %v1361 = vsub.s32 %v1358, %v1360
  %v1362 = vrot.slane %v1304, %v1361
  %v1363 = vcombine.high %v1362, %v1362
  %v1365 = vunpack.c.l.s4 1966171168
  %v1366 = vunpack.c.0.s8 %v1365
  %v1367 = vlaneseq
  %v1368 = vshrl.u32 %v1367, 7
  %v1369 = vsub.s32 %v1366, %v1368
  %v1370 = vrot.slane %v1362, %v1369
  %v1372 = vunpack.c.l.s4 1966171168
  %v1373 = vunpack.c.0.s8 %v1372
  %v1374 = vlaneseq
  %v1375 = vshrl.u32 %v1374, 7
  %v1376 = vsub.s32 %v1373, %v1375
  %v1377 = vrot.slane %v1363, %v1376
  %v1378 = vcombine.low %v1330, %v1344
  %v1379 = vcombine.low %v1352, %v1354
  %v1381 = vunpack.c.l.s4 1966171168
  %v1382 = vunpack.c.0.s8 %v1381
  %v1383 = vlaneseq
  %v1384 = vshrl.u32 %v1383, 7
  %v1385 = vsub.s32 %v1382, %v1384
  %v1386 = vrot.slane %v1378, %v1385
  %v1388 = vunpack.c.l.s4 1966171168
  %v1389 = vunpack.c.0.s8 %v1388
  %v1390 = vlaneseq
  %v1391 = vshrl.u32 %v1390, 7
  %v1392 = vsub.s32 %v1389, %v1391
  %v1393 = vrot.slane %v1379, %v1392
  %v1395 = vunpack.c.l.s4 1966171168
  %v1396 = vunpack.c.0.s8 %v1395
  %v1397 = vlaneseq
  %v1398 = vshrl.u32 %v1397, 7
  %v1399 = vsub.s32 %v1396, %v1398
  %v1400 = vrot.slane %v1337, %v1399
  %v1401 = vcombine.low %v1386, %v1393
  %v1403 = vunpack.c.l.s4 1966171168
  %v1404 = vunpack.c.0.s8 %v1403
  %v1405 = vlaneseq
  %v1406 = vshrl.u32 %v1405, 7
  %v1407 = vsub.s32 %v1404, %v1406
  %v1408 = vrot.slane %v1401, %v1407
  %v1410 = vunpack.c.l.s4 1966171168
  %v1411 = vunpack.c.0.s8 %v1410
  %v1412 = vlaneseq
  %v1413 = vshrl.u32 %v1412, 7
  %v1414 = vsub.s32 %v1411, %v1413
  %v1415 = vrot.slane %v1400, %v1414
  %v1416 = vcombine.low %v1408, %v1415
  %v1417 = vcombine.low %v1351, %v1353
  %v1418 = vcombine.low %v1355, %v1370
  %v1420 = vunpack.c.l.s4 1966171168
  %v1421 = vunpack.c.0.s8 %v1420
  %v1422 = vlaneseq
  %v1423 = vshrl.u32 %v1422, 7
  %v1424 = vsub.s32 %v1421, %v1423
  %v1425 = vrot.slane %v1417, %v1424
  %v1427 = vunpack.c.l.s4 1966171168
  %v1428 = vunpack.c.0.s8 %v1427
  %v1429 = vlaneseq
  %v1430 = vshrl.u32 %v1429, 7
  %v1431 = vsub.s32 %v1428, %v1430
  %v1432 = vrot.slane %v1418, %v1431
  %v1434 = vunpack.c.l.s4 1966171168
  %v1435 = vunpack.c.0.s8 %v1434
  %v1436 = vlaneseq
  %v1437 = vshrl.u32 %v1436, 7
  %v1438 = vsub.s32 %v1435, %v1437
  %v1439 = vrot.slane %v1377, %v1438
  %v1440 = vcombine.low %v1425, %v1432
  %v1442 = vunpack.c.l.s4 1966171168
  %v1443 = vunpack.c.0.s8 %v1442
  %v1444 = vlaneseq
  %v1445 = vshrl.u32 %v1444, 7
  %v1446 = vsub.s32 %v1443, %v1445
  %v1447 = vrot.slane %v1440, %v1446
  %v1449 = vunpack.c.l.s4 1966171168
  %v1450 = vunpack.c.0.s8 %v1449
  %v1451 = vlaneseq
  %v1452 = vshrl.u32 %v1451, 7
  %v1453 = vsub.s32 %v1450, %v1452
  %v1454 = vrot.slane %v1439, %v1453
  %v1455 = vcombine.low %v1447, %v1454
  %vm1458 = vcmask 1044480
  %v1459 = vsel %vm1458, %v1416, -inf
  %v1460 = vrot.slane %v1459, 4
  %v1461 = vmax.f32 %v1459, %v1460
  %v1462 = vrot.slane %v1461, 2
  %v1463 = vmax.f32 %v1461, %v1462
  %v1464 = vrot.slane %v1463, 1
  %v1465 = vmax.f32 %v1463, %v1464
  %v1466 = vsel %vm1458, %v1455, -inf
  %v1467 = vrot.slane %v1466, 4
  %v1468 = vmax.f32 %v1466, %v1467
  %v1469 = vrot.slane %v1468, 2
  %v1470 = vmax.f32 %v1468, %v1469
  %v1471 = vrot.slane %v1470, 1
  %v1472 = vmax.f32 %v1470, %v1471
  %v1475 = vsel %vm597, %v1472, %v1465
  %1477 = vst [vmem:[%s9] sm:$0x3] %v1475
  // Predicated region
  $region38: #{cnn_encoder_forward.1} parent=0 // pred_check
    _
  $region39: #{cnn_encoder_forward.1} parent=0 // pred_check_branch
    %1479 = sbr.rel (0) target = $region41
  $region40: #{cnn_encoder_forward.1} parent=0 // pred_region
    _
  $region41: #{cnn_encoder_forward.1} parent=0 // pred_fallthru
    _
  // Predicated region
  $region42: #{cnn_encoder_forward.1} parent=0 // pred_check
    _
  $region43: #{cnn_encoder_forward.1} parent=0 // pred_check_branch
    %1481 = sbr.rel (0) target = $region45
  $region44: #{cnn_encoder_forward.1} parent=0 // pred_region
    _
  $region45: #{cnn_encoder_forward.1} parent=0 // pred_fallthru
    _

</llo_original>
